<compile_context>
chip_gen: v6e
topology: v6e:2x2x1
jax: 0.10.0
libtpu: 0.0.40
codegen_flags: <defaults>
</compile_context>

<pallas_src>
import math
import jax
import jax.numpy as jnp
from jax.experimental import pallas as pl
from jax.experimental.pallas import tpu as pltpu

# Small version of the PyTorch defaults (n_dim=128) -> n_dim=32 here.
N_DIM = 32
N_P = 3
N_K = 2
NODE_DIM = 3
P = N_DIM * N_P                 # init_embed output width (96)
GIN = N_DIM * (N_K + 1) * N_P   # W_L_1_G* input width   (288)
LANE = 128                      # lane-dense activation width (96 padded to 128)
NEG_SLOPE = 0.01                # nn.LeakyReLU default
BN_EPS = 1e-5                   # nn.BatchNorm1d default
VMEM_LIMIT = 48 * 1024 * 1024   # explicit scoped-VMEM limit (v5e default is 16 MiB)


def _leaky(x):
    return jnp.where(x > 0, x, NEG_SLOPE * x)


def _plan_tiles(B, N, target_rows=1024, max_rows=2048):
    """Graphs per tile TB so each grid step sees ~target_rows flattened rows
    (amortizes ~600-cycle per-step overhead, fills MXU rows) without exceeding
    max_rows (keeps f32 intermediates well inside v7x's 64 MiB VMEM).  B is
    padded up to n_blocks*TB instead of degrading to tiny tiles; a multi-step
    grid is kept even so both v7x TensorCores get work."""
    tb = max(1, min(max_rows // max(N, 1), (target_rows + N - 1) // N))
    tb = min(tb, max(B, 1))
    n_blocks = -(-B // tb)
    if n_blocks > 1 and (n_blocks % 2):
        n_blocks += 1
    return tb, n_blocks, n_blocks * tb


# ------------------------- host-side weight preparation --------------------------
def _prep_weights(params):
    """Pad / re-block weights into lane-dense layouts (pure host-side plumbing).

    wg_pad[p, l] is a (128, 128) matrix that is zero except rows 0:96, columns
    32p:32(p+1), which hold rows l*96:(l+1)*96 of W_L_1_G{p+1}.  Because
    (L F) @ W == L (F @ W), kernel 1 computes h_l = sum_p F_p @ wg_pad[p, l]
    and only then applies L / L^2 on the node axis."""
    w0, b0 = params['init_embed']                       # (3, 96), (1, 96)
    w0_pad = jnp.zeros((NODE_DIM, LANE), jnp.float32).at[:, :P].set(w0)
    b0_pad = jnp.zeros((1, LANE), jnp.float32).at[:, :P].set(b0)

    wg_pad = jnp.zeros((N_P, N_K + 1, LANE, LANE), jnp.float32)
    bg_pad = jnp.zeros((1, LANE), jnp.float32)
    for p in range(N_P):
        wk, bk = params[f'W_L_1_G{p + 1}']              # (288, 32), (1, 32)
        for l in range(N_K + 1):
            wg_pad = wg_pad.at[p, l, :P, p * N_DIM:(p + 1) * N_DIM].set(
                wk[l * P:(l + 1) * P, :])
        bg_pad = bg_pad.at[:, p * N_DIM:(p + 1) * N_DIM].set(bk)
    return w0_pad, b0_pad, wg_pad, bg_pad


# -------------------------- kernel 1: graph conv block ---------------------------
def _make_gcn_kernel(TB, N, n_valid_rows, need_mask):
    rows = TB * N

    def prop(Lmat, v):
        """out[b] = Lmat[b] @ v[b] via unrolled VPU broadcast-FMAs (N is tiny,
        an MXU contraction of width N=8 would be <4% utilized)."""
        v3 = v.reshape(TB, N, LANE)
        acc = Lmat[:, :, 0][:, :, None] * v3[:, 0, :][:, None, :]
        for j in range(1, N):
            acc = acc + Lmat[:, :, j][:, :, None] * v3[:, j, :][:, None, :]
        return acc.reshape(rows, LANE)

    def kernel(x_ref, l_ref, l2_ref, w0_ref, b0_ref, wg_ref, bg_ref,
               f1_out, bn_out):
        x = x_ref[...].reshape(rows, NODE_DIM)

        # init_embed: K=3 contraction -> three VPU broadcast-FMAs, not the MXU.
        f0 = x[:, 0:1] * w0_ref[0:1, :]
        for j in range(1, NODE_DIM):
            f0 = f0 + x[:, j:j + 1] * w0_ref[j:j + 1, :]
        f0 = f0 + b0_ref[...]                            # (rows, 128), cols 96: = 0

        f0sq = f0 * f0
        f0cu = f0sq * f0
        powers = (f0, f0sq, f0cu)

        # h_l = sum_p F_p @ W[p, l]  (lane-dense 128x128 padded weight blocks)
        hs = []
        for l in range(N_K + 1):
            acc = jnp.dot(powers[0], wg_ref[0, l],
                          preferred_element_type=jnp.float32)
            for p in range(1, N_P):
                acc = acc + jnp.dot(powers[p], wg_ref[p, l],
                                    preferred_element_type=jnp.float32)
            hs.append(acc)

        # L-propagation commuted past the dense weights: just 2 VPU passes.
        g = hs[0] + prop(l_ref[...], hs[1]) + prop(l2_ref[...], hs[2]) + bg_ref[...]
        f1 = _leaky(g) + f0                               # cols 96:128 stay zero
        f1_out[...] = f1                                  # lane-dense 128-wide store

        # BatchNorm partial statistics for this tile (dummy pad rows masked out).
        if need_mask:
            start = pl.program_id(0) * rows
            rid = jax.lax.broadcasted_iota(jnp.int32, (rows, 1), 0)
            f1m = jnp.where(rid + start < n_valid_rows, f1, 0.0)
        else:
            f1m = f1
        s1 = jnp.sum(f1m, axis=0, keepdims=True)          # (1, 128)
        s2 = jnp.sum(f1m * f1, axis=0, keepdims=True)     # (1, 128)
        bn_out[...] = jnp.concatenate([s1, s2], axis=0)[None]   # (1, 2, 128)

    return kernel


# ------------------- kernel 2: (BN-folded) W_F + LeakyReLU ------------------------
def wf_kernel(f1_ref, wf_ref, bf_ref, out_ref):
    """BatchNorm folded into (wf, bf) on the host; consumes the 128-wide f1 slab."""
    y = jnp.dot(f1_ref[...], wf_ref[...], preferred_element_type=jnp.float32) + bf_ref[...]
    out_ref[...] = _leaky(y)


# ------------------------------- parameters --------------------------------------
def init_params(key):
    ks = jax.random.split(key, 6)

    def lin(k, fi, fo):
        k1, k2 = jax.random.split(k)
        bound = 1.0 / math.sqrt(fi)
        w = jax.random.uniform(k1, (fi, fo), jnp.float32, -bound, bound)
        b = jax.random.uniform(k2, (1, fo), jnp.float32, -bound, bound)
        return w, b

    return {
        'init_embed': lin(ks[0], NODE_DIM, P),
        'init_embed_depot': lin(ks[1], 2, N_DIM),
        'W_L_1_G1': lin(ks[2], GIN, N_DIM),
        'W_L_1_G2': lin(ks[3], GIN, N_DIM),
        'W_L_1_G3': lin(ks[4], GIN, N_DIM),
        'W_F': lin(ks[5], P, N_DIM),
    }


# --------------------------- graph construction (glue) ----------------------------
def build_graph(data):
    loc, deadline, workload = data['loc'], data['deadline'], data['workload']
    X = jnp.concatenate([loc, deadline[:, :, None], workload[:, :, None]], -1)
    X = jnp.concatenate([X[:, :, 0:2], (X[:, :, 2] / X[:, :, 2].max())[:, :, None]], -1)
    B, N, _ = X.shape
    diff = X[:, :, None, :] - X[:, None, :, :]
    dist = jnp.sqrt((diff ** 2).sum(-1))
    eye = jnp.eye(N, dtype=jnp.float32)
    off_diag = (eye[None] - 1.0).astype(bool).astype(jnp.float32)
    A = (1.0 / dist) * off_diag
    A = jnp.where(A != A, 0.0, A)      # NaN (diag inf*0) -> 0
    A = A / A.max()                     # global max (cross-batch, as in torch)
    D = eye[None] * (A.sum(-1) - 1.0)[:, None, :]
    L = D - A
    return X, L


# ------------------------------- forward pass -------------------------------------
def gcapcn_forward(data, params):
    X, L = build_graph(data)
    B, N, _ = X.shape
    L2 = jnp.matmul(L, L)                                   # tiny (B, N, N), host glue

    TB, n_blocks, B_pad = _plan_tiles(B, N)
    tile_rows = TB * N
    rows_pad = B_pad * N

    if B_pad != B:                                          # pad with dummy graphs
        padn = B_pad - B
        X = jnp.pad(X, ((0, padn), (0, 0), (0, 0)))
        L = jnp.pad(L, ((0, padn), (0, 0), (0, 0)))
        L2 = jnp.pad(L2, ((0, padn), (0, 0), (0, 0)))

    w0_pad, b0_pad, wg_pad, bg_pad = _prep_weights(params)

    kernel1 = _make_gcn_kernel(TB, N, B * N, need_mask=(B_pad != B))
    f1_pad, bn_part = pl.pallas_call(
        kernel1,
        out_shape=(jax.ShapeDtypeStruct((rows_pad, LANE), jnp.float32),
                   jax.ShapeDtypeStruct((n_blocks, 2, LANE), jnp.float32)),
        grid=(n_blocks,),
        in_specs=[
            pl.BlockSpec((TB, N, NODE_DIM), lambda b: (b, 0, 0)),
            pl.BlockSpec((TB, N, N), lambda b: (b, 0, 0)),
            pl.BlockSpec((TB, N, N), lambda b: (b, 0, 0)),
            pl.BlockSpec((NODE_DIM, LANE), lambda b: (0, 0)),
            pl.BlockSpec((1, LANE), lambda b: (0, 0)),
            pl.BlockSpec((N_P, N_K + 1, LANE, LANE), lambda b: (0, 0, 0, 0)),
            pl.BlockSpec((1, LANE), lambda b: (0, 0)),
        ],
        out_specs=(
            pl.BlockSpec((tile_rows, LANE), lambda b: (b, 0)),
            pl.BlockSpec((1, 2, LANE), lambda b: (b, 0, 0)),
        ),
        compiler_params=pltpu.CompilerParams(
            dimension_semantics=("parallel",),
            vmem_limit_bytes=VMEM_LIMIT),
    )(X, L, L2, w0_pad, b0_pad, wg_pad, bg_pad)

    # BatchNorm1d training-mode stats from the kernel's partial sums (no extra
    # HBM pass over f1).  Use only the 96 real columns; fold into W_F.
    count = float(B * N)
    totals = bn_part.sum(axis=0)                            # (2, 128)
    mean = totals[0:1, :P] / count                          # (1, 96)
    var = totals[1:2, :P] / count - mean * mean             # biased variance
    inv_std = 1.0 / jnp.sqrt(var + BN_EPS)                  # (1, 96)
    wf, bf = params['W_F']
    wf_fold = wf * inv_std.T                                # (96, 32)
    bf_fold = bf - (mean * inv_std) @ wf                    # (1, 32)
    wf_fold_pad = jnp.zeros((LANE, N_DIM), jnp.float32).at[:P, :].set(wf_fold)

    out_flat = pl.pallas_call(
        wf_kernel,
        out_shape=jax.ShapeDtypeStruct((rows_pad, N_DIM), jnp.float32),
        grid=(n_blocks,),
        in_specs=[
            pl.BlockSpec((tile_rows, LANE), lambda b: (b, 0)),
            pl.BlockSpec((LANE, N_DIM), lambda b: (0, 0)),
            pl.BlockSpec((1, N_DIM), lambda b: (0, 0)),
        ],
        out_specs=pl.BlockSpec((tile_rows, N_DIM), lambda b: (b, 0)),
        compiler_params=pltpu.CompilerParams(
            dimension_semantics=("parallel",),
            vmem_limit_bytes=VMEM_LIMIT),
    )(f1_pad, wf_fold_pad, bf_fold)

    f_final = out_flat.reshape(B_pad, N, N_DIM)[:B]         # drop dummy graphs

    # depot embedding: tiny (B,1,2)@(2,N_DIM) matmul, kept as plain-JAX glue
    wd, bd = params['init_embed_depot']
    depot_embed = data['depot'] @ wd + bd                   # (B, 1, N_DIM)
    h = jnp.concatenate([depot_embed, f_final], axis=1)     # (B, N+1, N_DIM)
    return h, h.mean(axis=1)


# --------------------------- pure-JAX reference (check) ---------------------------
def gcapcn_reference(data, params):
    X, L = build_graph(data)
    w0, b0 = params['init_embed']
    F0 = X @ w0 + b0
    F0sq = F0 * F0
    F0cu = F0 * F0sq
    Lsq = jnp.matmul(L, L)

    def g(f, name):
        w, b = params[name]
        cat = jnp.concatenate([f, jnp.matmul(L, f), jnp.matmul(Lsq, f)], -1)
        return cat @ w + b

    F1 = jnp.concatenate([g(F0, 'W_L_1_G1'), g(F0sq, 'W_L_1_G2'), g(F0cu, 'W_L_1_G3')], -1)
    F1 = _leaky(F1) + F0
    flat = F1.reshape(-1, P)
    F1n = (F1 - flat.mean(0)) / jnp.sqrt(flat.var(0) + BN_EPS)
    wf, bf = params['W_F']
    F_final = _leaky(F1n @ wf + bf)
    wd, bd = params['init_embed_depot']
    h = jnp.concatenate([data['depot'] @ wd + bd, F_final], axis=1)
    return h, h.mean(axis=1)


if __name__ == "__main__":
    B, N = 2, 8
    key = jax.random.PRNGKey(0)
    ks = jax.random.split(key, 5)
    data = {
        'loc': jax.random.uniform(ks[0], (B, N, 2), jnp.float32),
        'deadline': jax.random.uniform(ks[1], (B, N), jnp.float32, minval=0.5, maxval=2.0),
        'workload': jax.random.uniform(ks[2], (B, N), jnp.float32),
        'depot': jax.random.uniform(ks[3], (B, 1, 2), jnp.float32),
    }
    params = init_params(ks[4])

    h, h_mean = gcapcn_forward(data, params)
    jax.block_until_ready((h, h_mean))

    h_ref, h_mean_ref = gcapcn_reference(data, params)
    assert h.shape == (B, N + 1, N_DIM) and h_mean.shape == (B, N_DIM)
    assert jnp.allclose(h, h_ref, rtol=5e-3, atol=5e-3)
    assert jnp.allclose(h_mean, h_mean_ref, rtol=5e-3, atol=5e-3)
    print("KERNEL_OK")
</pallas_src>

<mosaic_0001>
module attributes {stable_mosaic.version = 11 : i64} {
  func.func @kernel(%arg0: i32, %arg1: memref<2x8x3xf32, #tpu.memory_space<vmem>>, %arg2: memref<2x8x8xf32, #tpu.memory_space<vmem>>, %arg3: memref<2x8x8xf32, #tpu.memory_space<vmem>>, %arg4: memref<3x128xf32, #tpu.memory_space<vmem>>, %arg5: memref<1x128xf32, #tpu.memory_space<vmem>>, %arg6: memref<3x3x128x128xf32, #tpu.memory_space<vmem>>, %arg7: memref<1x128xf32, #tpu.memory_space<vmem>>, %arg8: memref<16x128xf32, #tpu.memory_space<vmem>>, %arg9: memref<1x2x128xf32, #tpu.memory_space<vmem>>) attributes {dimension_semantics = [#tpu.dimension_semantics<parallel>], iteration_bounds = array<i64: 1>, scalar_prefetch = 0 : i64, scratch_operands = 0 : i64, tpu.core_type = #tpu.core_type<tc>, window_params = [{transform_indices = @transform_0, window_bounds = array<i64: 2, 8, 3>}, {transform_indices = @transform_1, window_bounds = array<i64: 2, 8, 8>}, {transform_indices = @transform_2, window_bounds = array<i64: 2, 8, 8>}, {pipeline_mode = #tpu.pipeline_mode<synchronous>, transform_indices = @transform_3, window_bounds = array<i64: 3, 128>}, {pipeline_mode = #tpu.pipeline_mode<synchronous>, transform_indices = @transform_4, window_bounds = array<i64: 1, 128>}, {pipeline_mode = #tpu.pipeline_mode<synchronous>, transform_indices = @transform_5, window_bounds = array<i64: 3, 3, 128, 128>}, {pipeline_mode = #tpu.pipeline_mode<synchronous>, transform_indices = @transform_6, window_bounds = array<i64: 1, 128>}, {transform_indices = @transform_7, window_bounds = array<i64: 16, 128>}, {transform_indices = @transform_8, window_bounds = array<i64: 1, 2, 128>}]} {
    %c0 = arith.constant 0 : index
    %c0_0 = arith.constant 0 : index
    %c0_1 = arith.constant 0 : index
    %0 = vector.load %arg1[%c0, %c0_0, %c0_1] : memref<2x8x3xf32, #tpu.memory_space<vmem>>, vector<2x8x3xf32>
    %1 = vector.shape_cast %0 : vector<2x8x3xf32> to vector<16x3xf32>
    %2 = vector.extract_strided_slice %1 {offsets = [0, 0], sizes = [16, 1], strides = [1, 1]} : vector<16x3xf32> to vector<16x1xf32>
    %c0_2 = arith.constant 0 : index
    %c0_3 = arith.constant 0 : index
    %3 = vector.load %arg4[%c0_2, %c0_3] : memref<3x128xf32, #tpu.memory_space<vmem>>, vector<1x128xf32>
    %4 = vector.broadcast %2 : vector<16x1xf32> to vector<16x128xf32>
    %5 = vector.broadcast %3 : vector<1x128xf32> to vector<16x128xf32>
    %6 = arith.mulf %4, %5 : vector<16x128xf32>
    %7 = vector.extract_strided_slice %1 {offsets = [0, 1], sizes = [16, 1], strides = [1, 1]} : vector<16x3xf32> to vector<16x1xf32>
    %c1 = arith.constant 1 : index
    %c0_4 = arith.constant 0 : index
    %8 = vector.load %arg4[%c1, %c0_4] : memref<3x128xf32, #tpu.memory_space<vmem>>, vector<1x128xf32>
    %9 = vector.broadcast %7 : vector<16x1xf32> to vector<16x128xf32>
    %10 = vector.broadcast %8 : vector<1x128xf32> to vector<16x128xf32>
    %11 = arith.mulf %9, %10 : vector<16x128xf32>
    %12 = arith.addf %6, %11 : vector<16x128xf32>
    %13 = vector.extract_strided_slice %1 {offsets = [0, 2], sizes = [16, 1], strides = [1, 1]} : vector<16x3xf32> to vector<16x1xf32>
    %c2 = arith.constant 2 : index
    %c0_5 = arith.constant 0 : index
    %14 = vector.load %arg4[%c2, %c0_5] : memref<3x128xf32, #tpu.memory_space<vmem>>, vector<1x128xf32>
    %15 = vector.broadcast %13 : vector<16x1xf32> to vector<16x128xf32>
    %16 = vector.broadcast %14 : vector<1x128xf32> to vector<16x128xf32>
    %17 = arith.mulf %15, %16 : vector<16x128xf32>
    %18 = arith.addf %12, %17 : vector<16x128xf32>
    %c0_6 = arith.constant 0 : index
    %c0_7 = arith.constant 0 : index
    %19 = vector.load %arg5[%c0_6, %c0_7] : memref<1x128xf32, #tpu.memory_space<vmem>>, vector<1x128xf32>
    %20 = vector.broadcast %19 : vector<1x128xf32> to vector<16x128xf32>
    %21 = arith.addf %18, %20 : vector<16x128xf32>
    %22 = arith.mulf %21, %21 : vector<16x128xf32>
    %23 = arith.mulf %22, %21 : vector<16x128xf32>
    %c0_8 = arith.constant 0 : index
    %c0_9 = arith.constant 0 : index
    %c0_10 = arith.constant 0 : index
    %c0_11 = arith.constant 0 : index
    %24 = vector.load %arg6[%c0_8, %c0_9, %c0_10, %c0_11] : memref<3x3x128x128xf32, #tpu.memory_space<vmem>>, vector<1x1x128x128xf32>
    %25 = vector.shape_cast %24 : vector<1x1x128x128xf32> to vector<128x128xf32>
    %cst = arith.constant dense<0.000000e+00> : vector<16x128xf32>
    %26 = tpu.matmul %21, %25, %cst {dimension_numbers = #tpu.dot_dimension_numbers<[1], [0], [0], [1], [0, 0, 1, 1], [], []>} : vector<16x128xf32>, vector<128x128xf32>, vector<16x128xf32> -> vector<16x128xf32>
    %c1_12 = arith.constant 1 : index
    %c0_13 = arith.constant 0 : index
    %c0_14 = arith.constant 0 : index
    %c0_15 = arith.constant 0 : index
    %27 = vector.load %arg6[%c1_12, %c0_13, %c0_14, %c0_15] : memref<3x3x128x128xf32, #tpu.memory_space<vmem>>, vector<1x1x128x128xf32>
    %28 = vector.shape_cast %27 : vector<1x1x128x128xf32> to vector<128x128xf32>
    %cst_16 = arith.constant dense<0.000000e+00> : vector<16x128xf32>
    %29 = tpu.matmul %22, %28, %cst_16 {dimension_numbers = #tpu.dot_dimension_numbers<[1], [0], [0], [1], [0, 0, 1, 1], [], []>} : vector<16x128xf32>, vector<128x128xf32>, vector<16x128xf32> -> vector<16x128xf32>
    %30 = arith.addf %26, %29 : vector<16x128xf32>
    %c2_17 = arith.constant 2 : index
    %c0_18 = arith.constant 0 : index
    %c0_19 = arith.constant 0 : index
    %c0_20 = arith.constant 0 : index
    %31 = vector.load %arg6[%c2_17, %c0_18, %c0_19, %c0_20] : memref<3x3x128x128xf32, #tpu.memory_space<vmem>>, vector<1x1x128x128xf32>
    %32 = vector.shape_cast %31 : vector<1x1x128x128xf32> to vector<128x128xf32>
    %cst_21 = arith.constant dense<0.000000e+00> : vector<16x128xf32>
    %33 = tpu.matmul %23, %32, %cst_21 {dimension_numbers = #tpu.dot_dimension_numbers<[1], [0], [0], [1], [0, 0, 1, 1], [], []>} : vector<16x128xf32>, vector<128x128xf32>, vector<16x128xf32> -> vector<16x128xf32>
    %34 = arith.addf %30, %33 : vector<16x128xf32>
    %c0_22 = arith.constant 0 : index
    %c1_23 = arith.constant 1 : index
    %c0_24 = arith.constant 0 : index
    %c0_25 = arith.constant 0 : index
    %35 = vector.load %arg6[%c0_22, %c1_23, %c0_24, %c0_25] : memref<3x3x128x128xf32, #tpu.memory_space<vmem>>, vector<1x1x128x128xf32>
    %36 = vector.shape_cast %35 : vector<1x1x128x128xf32> to vector<128x128xf32>
    %cst_26 = arith.constant dense<0.000000e+00> : vector<16x128xf32>
    %37 = tpu.matmul %21, %36, %cst_26 {dimension_numbers = #tpu.dot_dimension_numbers<[1], [0], [0], [1], [0, 0, 1, 1], [], []>} : vector<16x128xf32>, vector<128x128xf32>, vector<16x128xf32> -> vector<16x128xf32>
    %c1_27 = arith.constant 1 : index
    %c1_28 = arith.constant 1 : index
    %c0_29 = arith.constant 0 : index
    %c0_30 = arith.constant 0 : index
    %38 = vector.load %arg6[%c1_27, %c1_28, %c0_29, %c0_30] : memref<3x3x128x128xf32, #tpu.memory_space<vmem>>, vector<1x1x128x128xf32>
    %39 = vector.shape_cast %38 : vector<1x1x128x128xf32> to vector<128x128xf32>
    %cst_31 = arith.constant dense<0.000000e+00> : vector<16x128xf32>
    %40 = tpu.matmul %22, %39, %cst_31 {dimension_numbers = #tpu.dot_dimension_numbers<[1], [0], [0], [1], [0, 0, 1, 1], [], []>} : vector<16x128xf32>, vector<128x128xf32>, vector<16x128xf32> -> vector<16x128xf32>
    %41 = arith.addf %37, %40 : vector<16x128xf32>
    %c2_32 = arith.constant 2 : index
    %c1_33 = arith.constant 1 : index
    %c0_34 = arith.constant 0 : index
    %c0_35 = arith.constant 0 : index
    %42 = vector.load %arg6[%c2_32, %c1_33, %c0_34, %c0_35] : memref<3x3x128x128xf32, #tpu.memory_space<vmem>>, vector<1x1x128x128xf32>
    %43 = vector.shape_cast %42 : vector<1x1x128x128xf32> to vector<128x128xf32>
    %cst_36 = arith.constant dense<0.000000e+00> : vector<16x128xf32>
    %44 = tpu.matmul %23, %43, %cst_36 {dimension_numbers = #tpu.dot_dimension_numbers<[1], [0], [0], [1], [0, 0, 1, 1], [], []>} : vector<16x128xf32>, vector<128x128xf32>, vector<16x128xf32> -> vector<16x128xf32>
    %45 = arith.addf %41, %44 : vector<16x128xf32>
    %c0_37 = arith.constant 0 : index
    %c2_38 = arith.constant 2 : index
    %c0_39 = arith.constant 0 : index
    %c0_40 = arith.constant 0 : index
    %46 = vector.load %arg6[%c0_37, %c2_38, %c0_39, %c0_40] : memref<3x3x128x128xf32, #tpu.memory_space<vmem>>, vector<1x1x128x128xf32>
    %47 = vector.shape_cast %46 : vector<1x1x128x128xf32> to vector<128x128xf32>
    %cst_41 = arith.constant dense<0.000000e+00> : vector<16x128xf32>
    %48 = tpu.matmul %21, %47, %cst_41 {dimension_numbers = #tpu.dot_dimension_numbers<[1], [0], [0], [1], [0, 0, 1, 1], [], []>} : vector<16x128xf32>, vector<128x128xf32>, vector<16x128xf32> -> vector<16x128xf32>
    %c1_42 = arith.constant 1 : index
    %c2_43 = arith.constant 2 : index
    %c0_44 = arith.constant 0 : index
    %c0_45 = arith.constant 0 : index
    %49 = vector.load %arg6[%c1_42, %c2_43, %c0_44, %c0_45] : memref<3x3x128x128xf32, #tpu.memory_space<vmem>>, vector<1x1x128x128xf32>
    %50 = vector.shape_cast %49 : vector<1x1x128x128xf32> to vector<128x128xf32>
    %cst_46 = arith.constant dense<0.000000e+00> : vector<16x128xf32>
    %51 = tpu.matmul %22, %50, %cst_46 {dimension_numbers = #tpu.dot_dimension_numbers<[1], [0], [0], [1], [0, 0, 1, 1], [], []>} : vector<16x128xf32>, vector<128x128xf32>, vector<16x128xf32> -> vector<16x128xf32>
    %52 = arith.addf %48, %51 : vector<16x128xf32>
    %c2_47 = arith.constant 2 : index
    %c2_48 = arith.constant 2 : index
    %c0_49 = arith.constant 0 : index
    %c0_50 = arith.constant 0 : index
    %53 = vector.load %arg6[%c2_47, %c2_48, %c0_49, %c0_50] : memref<3x3x128x128xf32, #tpu.memory_space<vmem>>, vector<1x1x128x128xf32>
    %54 = vector.shape_cast %53 : vector<1x1x128x128xf32> to vector<128x128xf32>
    %cst_51 = arith.constant dense<0.000000e+00> : vector<16x128xf32>
    %55 = tpu.matmul %23, %54, %cst_51 {dimension_numbers = #tpu.dot_dimension_numbers<[1], [0], [0], [1], [0, 0, 1, 1], [], []>} : vector<16x128xf32>, vector<128x128xf32>, vector<16x128xf32> -> vector<16x128xf32>
    %56 = arith.addf %52, %55 : vector<16x128xf32>
    %c0_52 = arith.constant 0 : index
    %c0_53 = arith.constant 0 : index
    %c0_54 = arith.constant 0 : index
    %57 = vector.load %arg2[%c0_52, %c0_53, %c0_54] : memref<2x8x8xf32, #tpu.memory_space<vmem>>, vector<2x8x8xf32>
    %58 = vector.shape_cast %45 : vector<16x128xf32> to vector<2x8x128xf32>
    %59 = vector.extract_strided_slice %57 {offsets = [0, 0, 0], sizes = [2, 8, 1], strides = [1, 1, 1]} : vector<2x8x8xf32> to vector<2x8x1xf32>
    %60 = vector.shape_cast %59 : vector<2x8x1xf32> to vector<2x8xf32>
    %61 = vector.shape_cast %60 : vector<2x8xf32> to vector<2x8x1xf32>
    %62 = vector.extract_strided_slice %58 {offsets = [0, 0, 0], sizes = [2, 1, 128], strides = [1, 1, 1]} : vector<2x8x128xf32> to vector<2x1x128xf32>
    %63 = vector.shape_cast %62 : vector<2x1x128xf32> to vector<2x128xf32>
    %64 = vector.shape_cast %63 : vector<2x128xf32> to vector<2x1x128xf32>
    %65 = vector.broadcast %61 : vector<2x8x1xf32> to vector<2x8x128xf32>
    %66 = vector.broadcast %64 : vector<2x1x128xf32> to vector<2x8x128xf32>
    %67 = arith.mulf %65, %66 : vector<2x8x128xf32>
    %68 = vector.extract_strided_slice %57 {offsets = [0, 0, 1], sizes = [2, 8, 1], strides = [1, 1, 1]} : vector<2x8x8xf32> to vector<2x8x1xf32>
    %69 = vector.shape_cast %68 : vector<2x8x1xf32> to vector<2x8xf32>
    %70 = vector.shape_cast %69 : vector<2x8xf32> to vector<2x8x1xf32>
    %71 = vector.extract_strided_slice %58 {offsets = [0, 1, 0], sizes = [2, 1, 128], strides = [1, 1, 1]} : vector<2x8x128xf32> to vector<2x1x128xf32>
    %72 = vector.shape_cast %71 : vector<2x1x128xf32> to vector<2x128xf32>
    %73 = vector.shape_cast %72 : vector<2x128xf32> to vector<2x1x128xf32>
    %74 = vector.broadcast %70 : vector<2x8x1xf32> to vector<2x8x128xf32>
    %75 = vector.broadcast %73 : vector<2x1x128xf32> to vector<2x8x128xf32>
    %76 = arith.mulf %74, %75 : vector<2x8x128xf32>
    %77 = arith.addf %67, %76 : vector<2x8x128xf32>
    %78 = vector.extract_strided_slice %57 {offsets = [0, 0, 2], sizes = [2, 8, 1], strides = [1, 1, 1]} : vector<2x8x8xf32> to vector<2x8x1xf32>
    %79 = vector.shape_cast %78 : vector<2x8x1xf32> to vector<2x8xf32>
    %80 = vector.shape_cast %79 : vector<2x8xf32> to vector<2x8x1xf32>
    %81 = vector.extract_strided_slice %58 {offsets = [0, 2, 0], sizes = [2, 1, 128], strides = [1, 1, 1]} : vector<2x8x128xf32> to vector<2x1x128xf32>
    %82 = vector.shape_cast %81 : vector<2x1x128xf32> to vector<2x128xf32>
    %83 = vector.shape_cast %82 : vector<2x128xf32> to vector<2x1x128xf32>
    %84 = vector.broadcast %80 : vector<2x8x1xf32> to vector<2x8x128xf32>
    %85 = vector.broadcast %83 : vector<2x1x128xf32> to vector<2x8x128xf32>
    %86 = arith.mulf %84, %85 : vector<2x8x128xf32>
    %87 = arith.addf %77, %86 : vector<2x8x128xf32>
    %88 = vector.extract_strided_slice %57 {offsets = [0, 0, 3], sizes = [2, 8, 1], strides = [1, 1, 1]} : vector<2x8x8xf32> to vector<2x8x1xf32>
    %89 = vector.shape_cast %88 : vector<2x8x1xf32> to vector<2x8xf32>
    %90 = vector.shape_cast %89 : vector<2x8xf32> to vector<2x8x1xf32>
    %91 = vector.extract_strided_slice %58 {offsets = [0, 3, 0], sizes = [2, 1, 128], strides = [1, 1, 1]} : vector<2x8x128xf32> to vector<2x1x128xf32>
    %92 = vector.shape_cast %91 : vector<2x1x128xf32> to vector<2x128xf32>
    %93 = vector.shape_cast %92 : vector<2x128xf32> to vector<2x1x128xf32>
    %94 = vector.broadcast %90 : vector<2x8x1xf32> to vector<2x8x128xf32>
    %95 = vector.broadcast %93 : vector<2x1x128xf32> to vector<2x8x128xf32>
    %96 = arith.mulf %94, %95 : vector<2x8x128xf32>
    %97 = arith.addf %87, %96 : vector<2x8x128xf32>
    %98 = vector.extract_strided_slice %57 {offsets = [0, 0, 4], sizes = [2, 8, 1], strides = [1, 1, 1]} : vector<2x8x8xf32> to vector<2x8x1xf32>
    %99 = vector.shape_cast %98 : vector<2x8x1xf32> to vector<2x8xf32>
    %100 = vector.shape_cast %99 : vector<2x8xf32> to vector<2x8x1xf32>
    %101 = vector.extract_strided_slice %58 {offsets = [0, 4, 0], sizes = [2, 1, 128], strides = [1, 1, 1]} : vector<2x8x128xf32> to vector<2x1x128xf32>
    %102 = vector.shape_cast %101 : vector<2x1x128xf32> to vector<2x128xf32>
    %103 = vector.shape_cast %102 : vector<2x128xf32> to vector<2x1x128xf32>
    %104 = vector.broadcast %100 : vector<2x8x1xf32> to vector<2x8x128xf32>
    %105 = vector.broadcast %103 : vector<2x1x128xf32> to vector<2x8x128xf32>
    %106 = arith.mulf %104, %105 : vector<2x8x128xf32>
    %107 = arith.addf %97, %106 : vector<2x8x128xf32>
    %108 = vector.extract_strided_slice %57 {offsets = [0, 0, 5], sizes = [2, 8, 1], strides = [1, 1, 1]} : vector<2x8x8xf32> to vector<2x8x1xf32>
    %109 = vector.shape_cast %108 : vector<2x8x1xf32> to vector<2x8xf32>
    %110 = vector.shape_cast %109 : vector<2x8xf32> to vector<2x8x1xf32>
    %111 = vector.extract_strided_slice %58 {offsets = [0, 5, 0], sizes = [2, 1, 128], strides = [1, 1, 1]} : vector<2x8x128xf32> to vector<2x1x128xf32>
    %112 = vector.shape_cast %111 : vector<2x1x128xf32> to vector<2x128xf32>
    %113 = vector.shape_cast %112 : vector<2x128xf32> to vector<2x1x128xf32>
    %114 = vector.broadcast %110 : vector<2x8x1xf32> to vector<2x8x128xf32>
    %115 = vector.broadcast %113 : vector<2x1x128xf32> to vector<2x8x128xf32>
    %116 = arith.mulf %114, %115 : vector<2x8x128xf32>
    %117 = arith.addf %107, %116 : vector<2x8x128xf32>
    %118 = vector.extract_strided_slice %57 {offsets = [0, 0, 6], sizes = [2, 8, 1], strides = [1, 1, 1]} : vector<2x8x8xf32> to vector<2x8x1xf32>
    %119 = vector.shape_cast %118 : vector<2x8x1xf32> to vector<2x8xf32>
    %120 = vector.shape_cast %119 : vector<2x8xf32> to vector<2x8x1xf32>
    %121 = vector.extract_strided_slice %58 {offsets = [0, 6, 0], sizes = [2, 1, 128], strides = [1, 1, 1]} : vector<2x8x128xf32> to vector<2x1x128xf32>
    %122 = vector.shape_cast %121 : vector<2x1x128xf32> to vector<2x128xf32>
    %123 = vector.shape_cast %122 : vector<2x128xf32> to vector<2x1x128xf32>
    %124 = vector.broadcast %120 : vector<2x8x1xf32> to vector<2x8x128xf32>
    %125 = vector.broadcast %123 : vector<2x1x128xf32> to vector<2x8x128xf32>
    %126 = arith.mulf %124, %125 : vector<2x8x128xf32>
    %127 = arith.addf %117, %126 : vector<2x8x128xf32>
    %128 = vector.extract_strided_slice %57 {offsets = [0, 0, 7], sizes = [2, 8, 1], strides = [1, 1, 1]} : vector<2x8x8xf32> to vector<2x8x1xf32>
    %129 = vector.shape_cast %128 : vector<2x8x1xf32> to vector<2x8xf32>
    %130 = vector.shape_cast %129 : vector<2x8xf32> to vector<2x8x1xf32>
    %131 = vector.extract_strided_slice %58 {offsets = [0, 7, 0], sizes = [2, 1, 128], strides = [1, 1, 1]} : vector<2x8x128xf32> to vector<2x1x128xf32>
    %132 = vector.shape_cast %131 : vector<2x1x128xf32> to vector<2x128xf32>
    %133 = vector.shape_cast %132 : vector<2x128xf32> to vector<2x1x128xf32>
    %134 = vector.broadcast %130 : vector<2x8x1xf32> to vector<2x8x128xf32>
    %135 = vector.broadcast %133 : vector<2x1x128xf32> to vector<2x8x128xf32>
    %136 = arith.mulf %134, %135 : vector<2x8x128xf32>
    %137 = arith.addf %127, %136 : vector<2x8x128xf32>
    %138 = vector.shape_cast %137 : vector<2x8x128xf32> to vector<16x128xf32>
    %139 = arith.addf %34, %138 : vector<16x128xf32>
    %c0_55 = arith.constant 0 : index
    %c0_56 = arith.constant 0 : index
    %c0_57 = arith.constant 0 : index
    %140 = vector.load %arg3[%c0_55, %c0_56, %c0_57] : memref<2x8x8xf32, #tpu.memory_space<vmem>>, vector<2x8x8xf32>
    %141 = vector.shape_cast %56 : vector<16x128xf32> to vector<2x8x128xf32>
    %142 = vector.extract_strided_slice %140 {offsets = [0, 0, 0], sizes = [2, 8, 1], strides = [1, 1, 1]} : vector<2x8x8xf32> to vector<2x8x1xf32>
    %143 = vector.shape_cast %142 : vector<2x8x1xf32> to vector<2x8xf32>
    %144 = vector.shape_cast %143 : vector<2x8xf32> to vector<2x8x1xf32>
    %145 = vector.extract_strided_slice %141 {offsets = [0, 0, 0], sizes = [2, 1, 128], strides = [1, 1, 1]} : vector<2x8x128xf32> to vector<2x1x128xf32>
    %146 = vector.shape_cast %145 : vector<2x1x128xf32> to vector<2x128xf32>
    %147 = vector.shape_cast %146 : vector<2x128xf32> to vector<2x1x128xf32>
    %148 = vector.broadcast %144 : vector<2x8x1xf32> to vector<2x8x128xf32>
    %149 = vector.broadcast %147 : vector<2x1x128xf32> to vector<2x8x128xf32>
    %150 = arith.mulf %148, %149 : vector<2x8x128xf32>
    %151 = vector.extract_strided_slice %140 {offsets = [0, 0, 1], sizes = [2, 8, 1], strides = [1, 1, 1]} : vector<2x8x8xf32> to vector<2x8x1xf32>
    %152 = vector.shape_cast %151 : vector<2x8x1xf32> to vector<2x8xf32>
    %153 = vector.shape_cast %152 : vector<2x8xf32> to vector<2x8x1xf32>
    %154 = vector.extract_strided_slice %141 {offsets = [0, 1, 0], sizes = [2, 1, 128], strides = [1, 1, 1]} : vector<2x8x128xf32> to vector<2x1x128xf32>
    %155 = vector.shape_cast %154 : vector<2x1x128xf32> to vector<2x128xf32>
    %156 = vector.shape_cast %155 : vector<2x128xf32> to vector<2x1x128xf32>
    %157 = vector.broadcast %153 : vector<2x8x1xf32> to vector<2x8x128xf32>
    %158 = vector.broadcast %156 : vector<2x1x128xf32> to vector<2x8x128xf32>
    %159 = arith.mulf %157, %158 : vector<2x8x128xf32>
    %160 = arith.addf %150, %159 : vector<2x8x128xf32>
    %161 = vector.extract_strided_slice %140 {offsets = [0, 0, 2], sizes = [2, 8, 1], strides = [1, 1, 1]} : vector<2x8x8xf32> to vector<2x8x1xf32>
    %162 = vector.shape_cast %161 : vector<2x8x1xf32> to vector<2x8xf32>
    %163 = vector.shape_cast %162 : vector<2x8xf32> to vector<2x8x1xf32>
    %164 = vector.extract_strided_slice %141 {offsets = [0, 2, 0], sizes = [2, 1, 128], strides = [1, 1, 1]} : vector<2x8x128xf32> to vector<2x1x128xf32>
    %165 = vector.shape_cast %164 : vector<2x1x128xf32> to vector<2x128xf32>
    %166 = vector.shape_cast %165 : vector<2x128xf32> to vector<2x1x128xf32>
    %167 = vector.broadcast %163 : vector<2x8x1xf32> to vector<2x8x128xf32>
    %168 = vector.broadcast %166 : vector<2x1x128xf32> to vector<2x8x128xf32>
    %169 = arith.mulf %167, %168 : vector<2x8x128xf32>
    %170 = arith.addf %160, %169 : vector<2x8x128xf32>
    %171 = vector.extract_strided_slice %140 {offsets = [0, 0, 3], sizes = [2, 8, 1], strides = [1, 1, 1]} : vector<2x8x8xf32> to vector<2x8x1xf32>
    %172 = vector.shape_cast %171 : vector<2x8x1xf32> to vector<2x8xf32>
    %173 = vector.shape_cast %172 : vector<2x8xf32> to vector<2x8x1xf32>
    %174 = vector.extract_strided_slice %141 {offsets = [0, 3, 0], sizes = [2, 1, 128], strides = [1, 1, 1]} : vector<2x8x128xf32> to vector<2x1x128xf32>
    %175 = vector.shape_cast %174 : vector<2x1x128xf32> to vector<2x128xf32>
    %176 = vector.shape_cast %175 : vector<2x128xf32> to vector<2x1x128xf32>
    %177 = vector.broadcast %173 : vector<2x8x1xf32> to vector<2x8x128xf32>
    %178 = vector.broadcast %176 : vector<2x1x128xf32> to vector<2x8x128xf32>
    %179 = arith.mulf %177, %178 : vector<2x8x128xf32>
    %180 = arith.addf %170, %179 : vector<2x8x128xf32>
    %181 = vector.extract_strided_slice %140 {offsets = [0, 0, 4], sizes = [2, 8, 1], strides = [1, 1, 1]} : vector<2x8x8xf32> to vector<2x8x1xf32>
    %182 = vector.shape_cast %181 : vector<2x8x1xf32> to vector<2x8xf32>
    %183 = vector.shape_cast %182 : vector<2x8xf32> to vector<2x8x1xf32>
    %184 = vector.extract_strided_slice %141 {offsets = [0, 4, 0], sizes = [2, 1, 128], strides = [1, 1, 1]} : vector<2x8x128xf32> to vector<2x1x128xf32>
    %185 = vector.shape_cast %184 : vector<2x1x128xf32> to vector<2x128xf32>
    %186 = vector.shape_cast %185 : vector<2x128xf32> to vector<2x1x128xf32>
    %187 = vector.broadcast %183 : vector<2x8x1xf32> to vector<2x8x128xf32>
    %188 = vector.broadcast %186 : vector<2x1x128xf32> to vector<2x8x128xf32>
    %189 = arith.mulf %187, %188 : vector<2x8x128xf32>
    %190 = arith.addf %180, %189 : vector<2x8x128xf32>
    %191 = vector.extract_strided_slice %140 {offsets = [0, 0, 5], sizes = [2, 8, 1], strides = [1, 1, 1]} : vector<2x8x8xf32> to vector<2x8x1xf32>
    %192 = vector.shape_cast %191 : vector<2x8x1xf32> to vector<2x8xf32>
    %193 = vector.shape_cast %192 : vector<2x8xf32> to vector<2x8x1xf32>
    %194 = vector.extract_strided_slice %141 {offsets = [0, 5, 0], sizes = [2, 1, 128], strides = [1, 1, 1]} : vector<2x8x128xf32> to vector<2x1x128xf32>
    %195 = vector.shape_cast %194 : vector<2x1x128xf32> to vector<2x128xf32>
    %196 = vector.shape_cast %195 : vector<2x128xf32> to vector<2x1x128xf32>
    %197 = vector.broadcast %193 : vector<2x8x1xf32> to vector<2x8x128xf32>
    %198 = vector.broadcast %196 : vector<2x1x128xf32> to vector<2x8x128xf32>
    %199 = arith.mulf %197, %198 : vector<2x8x128xf32>
    %200 = arith.addf %190, %199 : vector<2x8x128xf32>
    %201 = vector.extract_strided_slice %140 {offsets = [0, 0, 6], sizes = [2, 8, 1], strides = [1, 1, 1]} : vector<2x8x8xf32> to vector<2x8x1xf32>
    %202 = vector.shape_cast %201 : vector<2x8x1xf32> to vector<2x8xf32>
    %203 = vector.shape_cast %202 : vector<2x8xf32> to vector<2x8x1xf32>
    %204 = vector.extract_strided_slice %141 {offsets = [0, 6, 0], sizes = [2, 1, 128], strides = [1, 1, 1]} : vector<2x8x128xf32> to vector<2x1x128xf32>
    %205 = vector.shape_cast %204 : vector<2x1x128xf32> to vector<2x128xf32>
    %206 = vector.shape_cast %205 : vector<2x128xf32> to vector<2x1x128xf32>
    %207 = vector.broadcast %203 : vector<2x8x1xf32> to vector<2x8x128xf32>
    %208 = vector.broadcast %206 : vector<2x1x128xf32> to vector<2x8x128xf32>
    %209 = arith.mulf %207, %208 : vector<2x8x128xf32>
    %210 = arith.addf %200, %209 : vector<2x8x128xf32>
    %211 = vector.extract_strided_slice %140 {offsets = [0, 0, 7], sizes = [2, 8, 1], strides = [1, 1, 1]} : vector<2x8x8xf32> to vector<2x8x1xf32>
    %212 = vector.shape_cast %211 : vector<2x8x1xf32> to vector<2x8xf32>
    %213 = vector.shape_cast %212 : vector<2x8xf32> to vector<2x8x1xf32>
    %214 = vector.extract_strided_slice %141 {offsets = [0, 7, 0], sizes = [2, 1, 128], strides = [1, 1, 1]} : vector<2x8x128xf32> to vector<2x1x128xf32>
    %215 = vector.shape_cast %214 : vector<2x1x128xf32> to vector<2x128xf32>
    %216 = vector.shape_cast %215 : vector<2x128xf32> to vector<2x1x128xf32>
    %217 = vector.broadcast %213 : vector<2x8x1xf32> to vector<2x8x128xf32>
    %218 = vector.broadcast %216 : vector<2x1x128xf32> to vector<2x8x128xf32>
    %219 = arith.mulf %217, %218 : vector<2x8x128xf32>
    %220 = arith.addf %210, %219 : vector<2x8x128xf32>
    %221 = vector.shape_cast %220 : vector<2x8x128xf32> to vector<16x128xf32>
    %222 = arith.addf %139, %221 : vector<16x128xf32>
    %c0_58 = arith.constant 0 : index
    %c0_59 = arith.constant 0 : index
    %223 = vector.load %arg7[%c0_58, %c0_59] : memref<1x128xf32, #tpu.memory_space<vmem>>, vector<1x128xf32>
    %224 = vector.broadcast %223 : vector<1x128xf32> to vector<16x128xf32>
    %225 = arith.addf %222, %224 : vector<16x128xf32>
    %cst_60 = arith.constant 0.000000e+00 : f32
    %226 = vector.broadcast %cst_60 : f32 to vector<16x128xf32>
    %227 = arith.cmpf ogt, %225, %226 : vector<16x128xf32>
    %cst_61 = arith.constant 0.00999999977 : f32
    %228 = vector.broadcast %cst_61 : f32 to vector<16x128xf32>
    %229 = arith.mulf %228, %225 : vector<16x128xf32>
    %230 = arith.select %227, %225, %229 : vector<16x128xi1>, vector<16x128xf32>
    %231 = arith.addf %230, %21 : vector<16x128xf32>
    %c0_62 = arith.constant 0 : index
    %c0_63 = arith.constant 0 : index
    %232 = vector.load %arg8[%c0_62, %c0_63] : memref<16x128xf32, #tpu.memory_space<vmem>>, vector<16x128xf32>
    tpu.vector_store %arg8[%c0_62, %c0_63], %231 {strides = array<i32>} : memref<16x128xf32, #tpu.memory_space<vmem>>, vector<16x128xf32>,
    %cst_64 = arith.constant dense<0.000000e+00> : vector<128xf32>
    %233 = vector.multi_reduction <add>, %231, %cst_64 [0] : vector<16x128xf32> to vector<128xf32>
    %234 = vector.shape_cast %233 : vector<128xf32> to vector<1x128xf32>
    %235 = arith.mulf %231, %231 : vector<16x128xf32>
    %cst_65 = arith.constant dense<0.000000e+00> : vector<128xf32>
    %236 = vector.multi_reduction <add>, %235, %cst_65 [0] : vector<16x128xf32> to vector<128xf32>
    %237 = vector.shape_cast %236 : vector<128xf32> to vector<1x128xf32>
    %238 = tpu.concatenate %234, %237 in 0 : vector<1x128xf32>, vector<1x128xf32> -> vector<2x128xf32>
    %239 = vector.shape_cast %238 : vector<2x128xf32> to vector<1x2x128xf32>
    %c0_66 = arith.constant 0 : index
    %c0_67 = arith.constant 0 : index
    %c0_68 = arith.constant 0 : index
    %240 = vector.load %arg9[%c0_66, %c0_67, %c0_68] : memref<1x2x128xf32, #tpu.memory_space<vmem>>, vector<1x2x128xf32>
    tpu.vector_store %arg9[%c0_66, %c0_67, %c0_68], %239 {strides = array<i32>} : memref<1x2x128xf32, #tpu.memory_space<vmem>>, vector<1x2x128xf32>,
    return
  }
  func.func @transform_0(%arg0: i32) -> (i32, i32, i32) {
    %c0_i32 = arith.constant 0 : i32
    %c0_i32_0 = arith.constant 0 : i32
    %c0_i32_1 = arith.constant 0 : i32
    return %arg0, %c0_i32, %c0_i32_0 : i32, i32, i32
  }
  func.func @transform_1(%arg0: i32) -> (i32, i32, i32) {
    %c0_i32 = arith.constant 0 : i32
    %c0_i32_0 = arith.constant 0 : i32
    %c0_i32_1 = arith.constant 0 : i32
    return %arg0, %c0_i32, %c0_i32_0 : i32, i32, i32
  }
  func.func @transform_2(%arg0: i32) -> (i32, i32, i32) {
    %c0_i32 = arith.constant 0 : i32
    %c0_i32_0 = arith.constant 0 : i32
    %c0_i32_1 = arith.constant 0 : i32
    return %arg0, %c0_i32, %c0_i32_0 : i32, i32, i32
  }
  func.func @transform_3(%arg0: i32) -> (i32, i32) {
    %c0_i32 = arith.constant 0 : i32
    %c0_i32_0 = arith.constant 0 : i32
    %c0_i32_1 = arith.constant 0 : i32
    return %c0_i32, %c0_i32_0 : i32, i32
  }
  func.func @transform_4(%arg0: i32) -> (i32, i32) {
    %c0_i32 = arith.constant 0 : i32
    %c0_i32_0 = arith.constant 0 : i32
    %c0_i32_1 = arith.constant 0 : i32
    return %c0_i32, %c0_i32_0 : i32, i32
  }
  func.func @transform_5(%arg0: i32) -> (i32, i32, i32, i32) {
    %c0_i32 = arith.constant 0 : i32
    %c0_i32_0 = arith.constant 0 : i32
    %c0_i32_1 = arith.constant 0 : i32
    %c0_i32_2 = arith.constant 0 : i32
    %c0_i32_3 = arith.constant 0 : i32
    return %c0_i32, %c0_i32_0, %c0_i32_1, %c0_i32_2 : i32, i32, i32, i32
  }
  func.func @transform_6(%arg0: i32) -> (i32, i32) {
    %c0_i32 = arith.constant 0 : i32
    %c0_i32_0 = arith.constant 0 : i32
    %c0_i32_1 = arith.constant 0 : i32
    return %c0_i32, %c0_i32_0 : i32, i32
  }
  func.func @transform_7(%arg0: i32) -> (i32, i32) {
    %c0_i32 = arith.constant 0 : i32
    %c0_i32_0 = arith.constant 0 : i32
    return %arg0, %c0_i32 : i32, i32
  }
  func.func @transform_8(%arg0: i32) -> (i32, i32, i32) {
    %c0_i32 = arith.constant 0 : i32
    %c0_i32_0 = arith.constant 0 : i32
    %c0_i32_1 = arith.constant 0 : i32
    return %arg0, %c0_i32, %c0_i32_0 : i32, i32, i32
  }
}

</mosaic_0001>

<llo_original>
// kernel: tpu_custom_call.1
$region0: #{tpu_custom_call.1}
  #allocation0 [shape = 'u32[]', space=smem, size = 0x4, offset = 0x4, fixed_abs, tag = 'smem constant byte address 0x4 - core index']
  #allocation1 [shape = 'u32[144,128]{1,0:T(1,128)}', space=vmem, size = 0x12000, scoped, tag = 'internal scratch']
  %s0 = inlined_call_operand.vmem [shape: f32[2,8,3], index: 0, kind: input, shape index: {}]
  %s1 = inlined_call_operand.vmem [shape: f32[2,8,8], index: 1, kind: input, shape index: {}]
  %s2 = inlined_call_operand.hbm [shape: f32[2,8,8], index: 2, kind: input, shape index: {}]
  %s3 = inlined_call_operand.vmem [shape: f32[3,128], index: 3, kind: input, shape index: {}]
  %s4 = inlined_call_operand.vmem [shape: f32[1,128], index: 4, kind: input, shape index: {}]
  %s5 = inlined_call_operand.hbm [shape: f32[3,3,128,128], index: 5, kind: input, shape index: {}]
  %s6 = inlined_call_operand.vmem [shape: f32[1,128], index: 6, kind: input, shape index: {}]
  %s7 = inlined_call_operand.hbm [shape: f32[16,128], index: 7, kind: output, shape index: {0}]
  %s8 = inlined_call_operand.hbm [shape: f32[1,2,128], index: 8, kind: output, shape index: {1}]
  %9 = xla_tuple %s7, %s8
  %s10 = sld [smem:[#allocation0]]
  $region54: #{tpu_custom_call.1} parent=0
    _
  %s12 = ssub.s32 1, %s10
  %s13 = scalar_select 0, %s12, %s10
  $region1: #{tpu_custom_call.1} parent=0
    #allocation2 [shape = 'u8[8192]{0}', space=vmem, size = 0x2000, scoped, tag = 'input window, operand 2, single buffered']
    #allocation3 [shape = 's32[1]{0}', space=sflag, size = 0x4, scoped, tag = 'scoped memory for tpu_custom_call.1']
    #allocation4 [shape = 's32[1]{0}', space=sflag, size = 0x4, scoped, tag = 'scoped memory for tpu_custom_call.1']
    #allocation5 [shape = 'u8[589824]{0}', space=vmem, size = 0x90000, scoped, tag = 'input window, operand 5, single buffered']
    #allocation6 [shape = 's32[1]{0}', space=sflag, size = 0x4, scoped, tag = 'scoped memory for tpu_custom_call.1']
    #allocation7 [shape = 'u8[8192]{0}', space=vmem, size = 0x2000, scoped, tag = 'output window, operand 0, single buffered']
    #allocation8 [shape = 'u8[1024]{0}', space=vmem, size = 0x400, scoped, tag = 'output window, operand 1, single buffered']
    #allocation9 [shape = 's32[1]{0}', space=sflag, size = 0x4, scoped, tag = 'scoped memory for tpu_custom_call.1']
    %14 = vsyncpa [#allocation3], 0
    %15 = vsyncpa [#allocation6], 0
    %16 = vsyncpa [#allocation4], 0
    %17 = vsyncpa [#allocation9], 0
    // Predicated region
    $region2: #{tpu_custom_call.1} parent=1 // pred_check
      _
    $region3: #{tpu_custom_call.1} parent=1 // pred_check_branch
      %19 = sbr.rel (0) target = $region5
    $region4: #{tpu_custom_call.1} parent=1 // pred_region
      _
    $region5: #{tpu_custom_call.1} parent=1 // pred_fallthru
      _
    // Predicated region
    $region6: #{tpu_custom_call.1} parent=1 // pred_check
      _
    $region7: #{tpu_custom_call.1} parent=1 // pred_check_branch
      %21 = sbr.rel (0) target = $region9
    $region8: #{tpu_custom_call.1} parent=1 // pred_region
      _
    $region9: #{tpu_custom_call.1} parent=1 // pred_fallthru
      _
    // Predicated region
    $region10: #{tpu_custom_call.1} parent=1 // pred_check
      _
    $region11: #{tpu_custom_call.1} parent=1 // pred_check_branch
      %23 = sbr.rel (0) target = $region13
    $region12: #{tpu_custom_call.1} parent=1 // pred_region
      %s25 = ssub.s32 256, 256
      %26 = vsyncadd [#allocation3], %s25
      %s27 = sshll.u32 [#allocation2], 4
      %s28 = int_to_ptr.vmem [resolvable:$true] %s27
      %33 = dma.hbm_to_vmem [thread:$0]  %s2, 256, %s28, [#allocation3], 128, 128, 8
    $region13: #{tpu_custom_call.1} parent=1 // pred_fallthru
      _
    // Predicated region
    $region14: #{tpu_custom_call.1} parent=1 // pred_check
      _
    $region15: #{tpu_custom_call.1} parent=1 // pred_check_branch
      %35 = sbr.rel (0) target = $region17
    $region16: #{tpu_custom_call.1} parent=1 // pred_region
      _
    $region17: #{tpu_custom_call.1} parent=1 // pred_fallthru
      _
    // Predicated region
    $region18: #{tpu_custom_call.1} parent=1 // pred_check
      _
    $region19: #{tpu_custom_call.1} parent=1 // pred_check_branch
      %37 = sbr.rel (0) target = $region21
    $region20: #{tpu_custom_call.1} parent=1 // pred_region
      _
    $region21: #{tpu_custom_call.1} parent=1 // pred_fallthru
      _
    // Predicated region
    $region22: #{tpu_custom_call.1} parent=1 // pred_check
      _
    $region23: #{tpu_custom_call.1} parent=1 // pred_check_branch
      %39 = sbr.rel (0) target = $region25
    $region24: #{tpu_custom_call.1} parent=1 // pred_region
      %s41 = ssub.s32 18432, 18432
      %42 = vsyncadd [#allocation6], %s41
      %s43 = sshll.u32 [#allocation5], 4
      %s44 = int_to_ptr.vmem [resolvable:$true] %s43
      %49 = dma.hbm_to_vmem [thread:$0]  %s5, 18432, %s44, [#allocation6], 128, 128, 8
    $region25: #{tpu_custom_call.1} parent=1 // pred_fallthru
      _
    // Predicated region
    $region26: #{tpu_custom_call.1} parent=1 // pred_check
      _
    $region27: #{tpu_custom_call.1} parent=1 // pred_check_branch
      %51 = sbr.rel (0) target = $region29
    $region28: #{tpu_custom_call.1} parent=1 // pred_region
      _
    $region29: #{tpu_custom_call.1} parent=1 // pred_fallthru
      _
    // Predicated region
    $region30: #{tpu_custom_call.1} parent=1 // pred_check
      _
    $region31: #{tpu_custom_call.1} parent=1 // pred_check_branch
      %53 = sbr.rel (0) target = $region33
    $region32: #{tpu_custom_call.1} parent=1 // pred_region
      %54 = dma.done [#allocation3], 256
    $region33: #{tpu_custom_call.1} parent=1 // pred_fallthru
      _
    // Predicated region
    $region34: #{tpu_custom_call.1} parent=1 // pred_check
      _
    $region35: #{tpu_custom_call.1} parent=1 // pred_check_branch
      %56 = sbr.rel (0) target = $region37
    $region36: #{tpu_custom_call.1} parent=1 // pred_region
      %57 = dma.done [#allocation6], 18432
    $region37: #{tpu_custom_call.1} parent=1 // pred_fallthru
      _
    %v58 = vld [vmem:[%s0] sm:$0xff]
    %v59 = vld [vmem:[%s0 + $0x8] sm:$0xff]
    %v60 = vld [vmem:[%s3] sm:$0x1]
    %62 = vset.pattern.permute.xlu0 0
    %63 = vperm.xlu0 %62, %v58
    %v64 = vpop.permute.xlu0 %63
    %67 = vset.pattern.permute.xlu0 0
    %68 = vperm.xlu0 %67, %v59
    %v69 = vpop.permute.xlu0 %68
    %v71 = vlaneseq
    %v72 = vshrl.u32 %v71, 7
    %v73 = vsub.s32 0, %v72
    %v74 = vrot.slane %v60, %v73
    %v75 = vmul.f32 %v64, %v74
    %v76 = vmul.f32 %v69, %v74
    %v77 = vld [vmem:[%s3 + $0x1] sm:$0x1]
    %78 = vset.pattern.permute.xlu0 1
    %79 = vperm.xlu0 %78, %v58
    %v80 = vpop.permute.xlu0 %79
    %82 = vset.pattern.permute.xlu0 1
    %83 = vperm.xlu0 %82, %v59
    %v84 = vpop.permute.xlu0 %83
    %v86 = vlaneseq
    %v87 = vshrl.u32 %v86, 7
    %v88 = vsub.s32 0, %v87
    %v89 = vrot.slane %v77, %v88
    %v90 = vmul.f32 %v80, %v89
    %v91 = vmul.f32 %v84, %v89
    %v92 = vadd.f32 %v75, %v90
    %v93 = vadd.f32 %v76, %v91
    %v94 = vld [vmem:[%s3 + $0x2] sm:$0x1]
    %95 = vset.pattern.permute.xlu0 2
    %96 = vperm.xlu0 %95, %v58
    %v97 = vpop.permute.xlu0 %96
    %99 = vset.pattern.permute.xlu0 2
    %100 = vperm.xlu0 %99, %v59
    %v101 = vpop.permute.xlu0 %100
    %v103 = vlaneseq
    %v104 = vshrl.u32 %v103, 7
    %v105 = vsub.s32 0, %v104
    %v106 = vrot.slane %v94, %v105
    %v107 = vmul.f32 %v97, %v106
    %v108 = vmul.f32 %v101, %v106
    %v109 = vadd.f32 %v92, %v107
    %v110 = vadd.f32 %v93, %v108
    %v111 = vld [vmem:[%s4] sm:$0x1]
    %v113 = vlaneseq
    %v114 = vshrl.u32 %v113, 7
    %v115 = vsub.s32 0, %v114
    %v116 = vrot.slane %v111, %v115
    %v118 = vadd.f32 %v109, %v116
    %v119 = vadd.f32 %v110, %v116
    %v120 = vmul.f32 %v118, %v118
    %v121 = vmul.f32 %v119, %v119
    %v122 = vmul.f32 %v120, %v118
    %v123 = vmul.f32 %v121, %v119
    %v124 = vld [vmem:[#allocation5] sm:$0xff]
    %v125 = vld [vmem:[#allocation5 + $0x8] sm:$0xff]
    %v126 = vld [vmem:[#allocation5 + $0x10] sm:$0xff]
    %v127 = vld [vmem:[#allocation5 + $0x18] sm:$0xff]
    %v128 = vld [vmem:[#allocation5 + $0x20] sm:$0xff]
    %v129 = vld [vmem:[#allocation5 + $0x28] sm:$0xff]
    %v130 = vld [vmem:[#allocation5 + $0x30] sm:$0xff]
    %v131 = vld [vmem:[#allocation5 + $0x38] sm:$0xff]
    %v132 = vld [vmem:[#allocation5 + $0x40] sm:$0xff]
    %v133 = vld [vmem:[#allocation5 + $0x48] sm:$0xff]
    %v134 = vld [vmem:[#allocation5 + $0x50] sm:$0xff]
    %v135 = vld [vmem:[#allocation5 + $0x58] sm:$0xff]
    %v136 = vld [vmem:[#allocation5 + $0x60] sm:$0xff]
    %v137 = vld [vmem:[#allocation5 + $0x68] sm:$0xff]
    %v138 = vld [vmem:[#allocation5 + $0x70] sm:$0xff]
    %v139 = vld [vmem:[#allocation5 + $0x78] sm:$0xff]
    %s140 = scalar_lea.vmem [#allocation5], 384
    %v141 = vld [vmem:[%s140] sm:$0xff]
    %v142 = vld [vmem:[%s140 + $0x8] sm:$0xff]
    %v143 = vld [vmem:[%s140 + $0x10] sm:$0xff]
    %v144 = vld [vmem:[%s140 + $0x18] sm:$0xff]
    %v145 = vld [vmem:[%s140 + $0x20] sm:$0xff]
    %v146 = vld [vmem:[%s140 + $0x28] sm:$0xff]
    %v147 = vld [vmem:[%s140 + $0x30] sm:$0xff]
    %v148 = vld [vmem:[%s140 + $0x38] sm:$0xff]
    %v149 = vld [vmem:[%s140 + $0x40] sm:$0xff]
    %v150 = vld [vmem:[%s140 + $0x48] sm:$0xff]
    %v151 = vld [vmem:[%s140 + $0x50] sm:$0xff]
    %v152 = vld [vmem:[%s140 + $0x58] sm:$0xff]
    %v153 = vld [vmem:[%s140 + $0x60] sm:$0xff]
    %v154 = vld [vmem:[%s140 + $0x68] sm:$0xff]
    %v155 = vld [vmem:[%s140 + $0x70] sm:$0xff]
    %v156 = vld [vmem:[%s140 + $0x78] sm:$0xff]
    %157 = vmatprep.subr.mxu0 0.0
    %158 = vmatpush1.msra.mxu0 %v156
    %159 = vmatprep.subr.mxu0 0.0
    %160 = vmatpush1.msra.mxu0 %v155
    %161 = vmatprep.subr.mxu0 0.0
    %162 = vmatpush1.msra.mxu0 %v154
    %163 = vmatprep.subr.mxu0 0.0
    %164 = vmatpush1.msra.mxu0 %v153
    %165 = vmatprep.subr.mxu0 0.0
    %166 = vmatpush1.msra.mxu0 %v152
    %167 = vmatprep.subr.mxu0 0.0
    %168 = vmatpush1.msra.mxu0 %v151
    %169 = vmatprep.subr.mxu0 0.0
    %170 = vmatpush1.msra.mxu0 %v150
    %171 = vmatprep.subr.mxu0 0.0
    %172 = vmatpush1.msra.mxu0 %v149
    %173 = vmatprep.subr.mxu0 0.0
    %174 = vmatpush1.msra.mxu0 %v148
    %175 = vmatprep.subr.mxu0 0.0
    %176 = vmatpush1.msra.mxu0 %v147
    %177 = vmatprep.subr.mxu0 0.0
    %178 = vmatpush1.msra.mxu0 %v146
    %179 = vmatprep.subr.mxu0 0.0
    %180 = vmatpush1.msra.mxu0 %v145
    %181 = vmatprep.subr.mxu0 0.0
    %182 = vmatpush1.msra.mxu0 %v144
    %183 = vmatprep.subr.mxu0 0.0
    %184 = vmatpush1.msra.mxu0 %v143
    %185 = vmatprep.subr.mxu0 0.0
    %186 = vmatpush1.msra.mxu0 %v142
    %187 = vmatprep.subr.mxu0 0.0
    %188 = vmatpush1.msra.mxu0 %v141
    %189 = vmatprep.subr.mxu0 0.0
    %190 = vmatpush2.msra.mxu0 0.0
    %191 = vmatprep.subr.mxu0 0.0
    %192 = vmatpush2.msra.mxu0 0.0
    %193 = vmatprep.subr.mxu0 0.0
    %194 = vmatpush2.msra.mxu0 0.0
    %195 = vmatprep.subr.mxu0 0.0
    %196 = vmatpush2.msra.mxu0 0.0
    %197 = vmatprep.subr.mxu0 0.0
    %198 = vmatpush2.msra.mxu0 0.0
    %199 = vmatprep.subr.mxu0 0.0
    %200 = vmatpush2.msra.mxu0 0.0
    %201 = vmatprep.subr.mxu0 0.0
    %202 = vmatpush2.msra.mxu0 0.0
    %203 = vmatprep.subr.mxu0 0.0
    %204 = vmatpush2.msra.mxu0 0.0
    %205 = vmatprep.subr.mxu0 0.0
    %206 = vmatpush2.msra.mxu0 0.0
    %207 = vmatprep.subr.mxu0 0.0
    %208 = vmatpush2.msra.mxu0 0.0
    %209 = vmatprep.subr.mxu0 0.0
    %210 = vmatpush2.msra.mxu0 0.0
    %211 = vmatprep.subr.mxu0 0.0
    %212 = vmatpush2.msra.mxu0 0.0
    %213 = vmatprep.subr.mxu0 0.0
    %214 = vmatpush2.msra.mxu0 0.0
    %215 = vmatprep.subr.mxu0 0.0
    %216 = vmatpush2.msra.mxu0 0.0
    %217 = vmatprep.subr.mxu0 0.0
    %218 = vmatpush2.msra.mxu0 0.0
    %219 = vmatprep.subr.mxu0 0.0
    %220 = vmatpush2.msra.mxu0 0.0
    %221 = vmatprep.mubr.f32.mxu0 0.0
    %222 = vmatmul.mubr.f32.gmra.mxu0 %v120
    %v223 = vpop.f32.mrf.mxu0
    %v224 = vadd.f32 0.0, %v223
    %v225 = vpop.f32.mrf.mxu0
    %226 = vmatprep.mubr.f32.mxu0 0.0
    %227 = vmatmul.mubr.f32.gmra.mxu0 %v121
    %v228 = vpop.f32.mrf.mxu0
    %v229 = vadd.f32 0.0, %v228
    %v230 = vpop.f32.mrf.mxu0
    %231 = vdwg.mxu0
    %232 = vmatprep.subr.mxu0 0.0
    %233 = vmatpush1.msra.mxu0 %v139
    %234 = vmatprep.subr.mxu0 0.0
    %235 = vmatpush1.msra.mxu0 %v138
    %236 = vmatprep.subr.mxu0 0.0
    %237 = vmatpush1.msra.mxu0 %v137
    %238 = vmatprep.subr.mxu0 0.0
    %239 = vmatpush1.msra.mxu0 %v136
    %240 = vmatprep.subr.mxu0 0.0
    %241 = vmatpush1.msra.mxu0 %v135
    %242 = vmatprep.subr.mxu0 0.0
    %243 = vmatpush1.msra.mxu0 %v134
    %244 = vmatprep.subr.mxu0 0.0
    %245 = vmatpush1.msra.mxu0 %v133
    %246 = vmatprep.subr.mxu0 0.0
    %247 = vmatpush1.msra.mxu0 %v132
    %248 = vmatprep.subr.mxu0 0.0
    %249 = vmatpush1.msra.mxu0 %v131
    %250 = vmatprep.subr.mxu0 0.0
    %251 = vmatpush1.msra.mxu0 %v130
    %252 = vmatprep.subr.mxu0 0.0
    %253 = vmatpush1.msra.mxu0 %v129
    %254 = vmatprep.subr.mxu0 0.0
    %255 = vmatpush1.msra.mxu0 %v128
    %256 = vmatprep.subr.mxu0 0.0
    %257 = vmatpush1.msra.mxu0 %v127
    %258 = vmatprep.subr.mxu0 0.0
    %259 = vmatpush1.msra.mxu0 %v126
    %260 = vmatprep.subr.mxu0 0.0
    %261 = vmatpush1.msra.mxu0 %v125
    %262 = vmatprep.subr.mxu0 0.0
    %263 = vmatpush1.msra.mxu0 %v124
    %264 = vmatprep.subr.mxu0 0.0
    %265 = vmatpush2.msra.mxu0 0.0
    %266 = vmatprep.subr.mxu0 0.0
    %267 = vmatpush2.msra.mxu0 0.0
    %268 = vmatprep.subr.mxu0 0.0
    %269 = vmatpush2.msra.mxu0 0.0
    %270 = vmatprep.subr.mxu0 0.0
    %271 = vmatpush2.msra.mxu0 0.0
    %272 = vmatprep.subr.mxu0 0.0
    %273 = vmatpush2.msra.mxu0 0.0
    %274 = vmatprep.subr.mxu0 0.0
    %275 = vmatpush2.msra.mxu0 0.0
    %276 = vmatprep.subr.mxu0 0.0
    %277 = vmatpush2.msra.mxu0 0.0
    %278 = vmatprep.subr.mxu0 0.0
    %279 = vmatpush2.msra.mxu0 0.0
    %280 = vmatprep.subr.mxu0 0.0
    %281 = vmatpush2.msra.mxu0 0.0
    %282 = vmatprep.subr.mxu0 0.0
    %283 = vmatpush2.msra.mxu0 0.0
    %284 = vmatprep.subr.mxu0 0.0
    %285 = vmatpush2.msra.mxu0 0.0
    %286 = vmatprep.subr.mxu0 0.0
    %287 = vmatpush2.msra.mxu0 0.0
    %288 = vmatprep.subr.mxu0 0.0
    %289 = vmatpush2.msra.mxu0 0.0
    %290 = vmatprep.subr.mxu0 0.0
    %291 = vmatpush2.msra.mxu0 0.0
    %292 = vmatprep.subr.mxu0 0.0
    %293 = vmatpush2.msra.mxu0 0.0
    %294 = vmatprep.subr.mxu0 0.0
    %295 = vmatpush2.msra.mxu0 0.0
    %296 = vmatprep.mubr.f32.mxu0 0.0
    %297 = vmatmul.mubr.f32.gmra.mxu0 %v118
    %v298 = vpop.f32.mrf.mxu0
    %v299 = vadd.f32 %v224, %v298
    %v300 = vpop.f32.mrf.mxu0
    %301 = vmatprep.mubr.f32.mxu0 0.0
    %302 = vmatmul.mubr.f32.gmra.mxu0 %v119
    %v303 = vpop.f32.mrf.mxu0
    %v304 = vadd.f32 %v229, %v303
    %v305 = vpop.f32.mrf.mxu0
    %306 = vdwg.mxu0
    %s307 = scalar_lea.vmem [#allocation5], 768
    %v308 = vld [vmem:[%s307] sm:$0xff]
    %v309 = vld [vmem:[%s307 + $0x8] sm:$0xff]
    %v310 = vld [vmem:[%s307 + $0x10] sm:$0xff]
    %v311 = vld [vmem:[%s307 + $0x18] sm:$0xff]
    %v312 = vld [vmem:[%s307 + $0x20] sm:$0xff]
    %v313 = vld [vmem:[%s307 + $0x28] sm:$0xff]
    %v314 = vld [vmem:[%s307 + $0x30] sm:$0xff]
    %v315 = vld [vmem:[%s307 + $0x38] sm:$0xff]
    %v316 = vld [vmem:[%s307 + $0x40] sm:$0xff]
    %v317 = vld [vmem:[%s307 + $0x48] sm:$0xff]
    %v318 = vld [vmem:[%s307 + $0x50] sm:$0xff]
    %v319 = vld [vmem:[%s307 + $0x58] sm:$0xff]
    %v320 = vld [vmem:[%s307 + $0x60] sm:$0xff]
    %v321 = vld [vmem:[%s307 + $0x68] sm:$0xff]
    %v322 = vld [vmem:[%s307 + $0x70] sm:$0xff]
    %v323 = vld [vmem:[%s307 + $0x78] sm:$0xff]
    %324 = vmatprep.subr.mxu0 0.0
    %325 = vmatpush1.msra.mxu0 %v323
    %326 = vmatprep.subr.mxu0 0.0
    %327 = vmatpush1.msra.mxu0 %v322
    %328 = vmatprep.subr.mxu0 0.0
    %329 = vmatpush1.msra.mxu0 %v321
    %330 = vmatprep.subr.mxu0 0.0
    %331 = vmatpush1.msra.mxu0 %v320
    %332 = vmatprep.subr.mxu0 0.0
    %333 = vmatpush1.msra.mxu0 %v319
    %334 = vmatprep.subr.mxu0 0.0
    %335 = vmatpush1.msra.mxu0 %v318
    %336 = vmatprep.subr.mxu0 0.0
    %337 = vmatpush1.msra.mxu0 %v317
    %338 = vmatprep.subr.mxu0 0.0
    %339 = vmatpush1.msra.mxu0 %v316
    %340 = vmatprep.subr.mxu0 0.0
    %341 = vmatpush1.msra.mxu0 %v315
    %342 = vmatprep.subr.mxu0 0.0
    %343 = vmatpush1.msra.mxu0 %v314
    %344 = vmatprep.subr.mxu0 0.0
    %345 = vmatpush1.msra.mxu0 %v313
    %346 = vmatprep.subr.mxu0 0.0
    %347 = vmatpush1.msra.mxu0 %v312
    %348 = vmatprep.subr.mxu0 0.0
    %349 = vmatpush1.msra.mxu0 %v311
    %350 = vmatprep.subr.mxu0 0.0
    %351 = vmatpush1.msra.mxu0 %v310
    %352 = vmatprep.subr.mxu0 0.0
    %353 = vmatpush1.msra.mxu0 %v309
    %354 = vmatprep.subr.mxu0 0.0
    %355 = vmatpush1.msra.mxu0 %v308
    %356 = vmatprep.subr.mxu0 0.0
    %357 = vmatpush2.msra.mxu0 0.0
    %358 = vmatprep.subr.mxu0 0.0
    %359 = vmatpush2.msra.mxu0 0.0
    %360 = vmatprep.subr.mxu0 0.0
    %361 = vmatpush2.msra.mxu0 0.0
    %362 = vmatprep.subr.mxu0 0.0
    %363 = vmatpush2.msra.mxu0 0.0
    %364 = vmatprep.subr.mxu0 0.0
    %365 = vmatpush2.msra.mxu0 0.0
    %366 = vmatprep.subr.mxu0 0.0
    %367 = vmatpush2.msra.mxu0 0.0
    %368 = vmatprep.subr.mxu0 0.0
    %369 = vmatpush2.msra.mxu0 0.0
    %370 = vmatprep.subr.mxu0 0.0
    %371 = vmatpush2.msra.mxu0 0.0
    %372 = vmatprep.subr.mxu0 0.0
    %373 = vmatpush2.msra.mxu0 0.0
    %374 = vmatprep.subr.mxu0 0.0
    %375 = vmatpush2.msra.mxu0 0.0
    %376 = vmatprep.subr.mxu0 0.0
    %377 = vmatpush2.msra.mxu0 0.0
    %378 = vmatprep.subr.mxu0 0.0
    %379 = vmatpush2.msra.mxu0 0.0
    %380 = vmatprep.subr.mxu0 0.0
    %381 = vmatpush2.msra.mxu0 0.0
    %382 = vmatprep.subr.mxu0 0.0
    %383 = vmatpush2.msra.mxu0 0.0
    %384 = vmatprep.subr.mxu0 0.0
    %385 = vmatpush2.msra.mxu0 0.0
    %386 = vmatprep.subr.mxu0 0.0
    %387 = vmatpush2.msra.mxu0 0.0
    %388 = vmatprep.mubr.f32.mxu0 0.0
    %389 = vmatmul.mubr.f32.gmra.mxu0 %v122
    %v390 = vpop.f32.mrf.mxu0
    %v391 = vadd.f32 0.0, %v390
    %v392 = vpop.f32.mrf.mxu0
    %393 = vmatprep.mubr.f32.mxu0 0.0
    %394 = vmatmul.mubr.f32.gmra.mxu0 %v123
    %v395 = vpop.f32.mrf.mxu0
    %v396 = vadd.f32 0.0, %v395
    %v397 = vpop.f32.mrf.mxu0
    %398 = vdwg.mxu0
    %v399 = vadd.f32 %v299, %v391
    %v400 = vadd.f32 %v304, %v396
    %s401 = scalar_lea.vmem [#allocation5], 128
    %v402 = vld [vmem:[%s401] sm:$0xff]
    %v403 = vld [vmem:[%s401 + $0x8] sm:$0xff]
    %v404 = vld [vmem:[%s401 + $0x10] sm:$0xff]
    %v405 = vld [vmem:[%s401 + $0x18] sm:$0xff]
    %v406 = vld [vmem:[%s401 + $0x20] sm:$0xff]
    %v407 = vld [vmem:[%s401 + $0x28] sm:$0xff]
    %v408 = vld [vmem:[%s401 + $0x30] sm:$0xff]
    %v409 = vld [vmem:[%s401 + $0x38] sm:$0xff]
    %v410 = vld [vmem:[%s401 + $0x40] sm:$0xff]
    %v411 = vld [vmem:[%s401 + $0x48] sm:$0xff]
    %v412 = vld [vmem:[%s401 + $0x50] sm:$0xff]
    %v413 = vld [vmem:[%s401 + $0x58] sm:$0xff]
    %v414 = vld [vmem:[%s401 + $0x60] sm:$0xff]
    %v415 = vld [vmem:[%s401 + $0x68] sm:$0xff]
    %v416 = vld [vmem:[%s401 + $0x70] sm:$0xff]
    %v417 = vld [vmem:[%s401 + $0x78] sm:$0xff]
    %s418 = scalar_lea.vmem [#allocation5], 512
    %v419 = vld [vmem:[%s418] sm:$0xff]
    %v420 = vld [vmem:[%s418 + $0x8] sm:$0xff]
    %v421 = vld [vmem:[%s418 + $0x10] sm:$0xff]
    %v422 = vld [vmem:[%s418 + $0x18] sm:$0xff]
    %v423 = vld [vmem:[%s418 + $0x20] sm:$0xff]
    %v424 = vld [vmem:[%s418 + $0x28] sm:$0xff]
    %v425 = vld [vmem:[%s418 + $0x30] sm:$0xff]
    %v426 = vld [vmem:[%s418 + $0x38] sm:$0xff]
    %v427 = vld [vmem:[%s418 + $0x40] sm:$0xff]
    %v428 = vld [vmem:[%s418 + $0x48] sm:$0xff]
    %v429 = vld [vmem:[%s418 + $0x50] sm:$0xff]
    %v430 = vld [vmem:[%s418 + $0x58] sm:$0xff]
    %v431 = vld [vmem:[%s418 + $0x60] sm:$0xff]
    %v432 = vld [vmem:[%s418 + $0x68] sm:$0xff]
    %v433 = vld [vmem:[%s418 + $0x70] sm:$0xff]
    %v434 = vld [vmem:[%s418 + $0x78] sm:$0xff]
    %435 = vmatprep.subr.mxu0 0.0
    %436 = vmatpush1.msra.mxu0 %v434
    %437 = vmatprep.subr.mxu0 0.0
    %438 = vmatpush1.msra.mxu0 %v433
    %439 = vmatprep.subr.mxu0 0.0
    %440 = vmatpush1.msra.mxu0 %v432
    %441 = vmatprep.subr.mxu0 0.0
    %442 = vmatpush1.msra.mxu0 %v431
    %443 = vmatprep.subr.mxu0 0.0
    %444 = vmatpush1.msra.mxu0 %v430
    %445 = vmatprep.subr.mxu0 0.0
    %446 = vmatpush1.msra.mxu0 %v429
    %447 = vmatprep.subr.mxu0 0.0
    %448 = vmatpush1.msra.mxu0 %v428
    %449 = vmatprep.subr.mxu0 0.0
    %450 = vmatpush1.msra.mxu0 %v427
    %451 = vmatprep.subr.mxu0 0.0
    %452 = vmatpush1.msra.mxu0 %v426
    %453 = vmatprep.subr.mxu0 0.0
    %454 = vmatpush1.msra.mxu0 %v425
    %455 = vmatprep.subr.mxu0 0.0
    %456 = vmatpush1.msra.mxu0 %v424
    %457 = vmatprep.subr.mxu0 0.0
    %458 = vmatpush1.msra.mxu0 %v423
    %459 = vmatprep.subr.mxu0 0.0
    %460 = vmatpush1.msra.mxu0 %v422
    %461 = vmatprep.subr.mxu0 0.0
    %462 = vmatpush1.msra.mxu0 %v421
    %463 = vmatprep.subr.mxu0 0.0
    %464 = vmatpush1.msra.mxu0 %v420
    %465 = vmatprep.subr.mxu0 0.0
    %466 = vmatpush1.msra.mxu0 %v419
    %467 = vmatprep.subr.mxu0 0.0
    %468 = vmatpush2.msra.mxu0 0.0
    %469 = vmatprep.subr.mxu0 0.0
    %470 = vmatpush2.msra.mxu0 0.0
    %471 = vmatprep.subr.mxu0 0.0
    %472 = vmatpush2.msra.mxu0 0.0
    %473 = vmatprep.subr.mxu0 0.0
    %474 = vmatpush2.msra.mxu0 0.0
    %475 = vmatprep.subr.mxu0 0.0
    %476 = vmatpush2.msra.mxu0 0.0
    %477 = vmatprep.subr.mxu0 0.0
    %478 = vmatpush2.msra.mxu0 0.0
    %479 = vmatprep.subr.mxu0 0.0
    %480 = vmatpush2.msra.mxu0 0.0
    %481 = vmatprep.subr.mxu0 0.0
    %482 = vmatpush2.msra.mxu0 0.0
    %483 = vmatprep.subr.mxu0 0.0
    %484 = vmatpush2.msra.mxu0 0.0
    %485 = vmatprep.subr.mxu0 0.0
    %486 = vmatpush2.msra.mxu0 0.0
    %487 = vmatprep.subr.mxu0 0.0
    %488 = vmatpush2.msra.mxu0 0.0
    %489 = vmatprep.subr.mxu0 0.0
    %490 = vmatpush2.msra.mxu0 0.0
    %491 = vmatprep.subr.mxu0 0.0
    %492 = vmatpush2.msra.mxu0 0.0
    %493 = vmatprep.subr.mxu0 0.0
    %494 = vmatpush2.msra.mxu0 0.0
    %495 = vmatprep.subr.mxu0 0.0
    %496 = vmatpush2.msra.mxu0 0.0
    %497 = vmatprep.subr.mxu0 0.0
    %498 = vmatpush2.msra.mxu0 0.0
    %499 = vmatprep.mubr.f32.mxu0 0.0
    %500 = vmatmul.mubr.f32.gmra.mxu0 %v120
    %v501 = vpop.f32.mrf.mxu0
    %v502 = vadd.f32 0.0, %v501
    %v503 = vpop.f32.mrf.mxu0
    %504 = vmatprep.mubr.f32.mxu0 0.0
    %505 = vmatmul.mubr.f32.gmra.mxu0 %v121
    %v506 = vpop.f32.mrf.mxu0
    %v507 = vadd.f32 0.0, %v506
    %v508 = vpop.f32.mrf.mxu0
    %509 = vdwg.mxu0
    %510 = vmatprep.subr.mxu0 0.0
    %511 = vmatpush1.msra.mxu0 %v417
    %512 = vmatprep.subr.mxu0 0.0
    %513 = vmatpush1.msra.mxu0 %v416
    %514 = vmatprep.subr.mxu0 0.0
    %515 = vmatpush1.msra.mxu0 %v415
    %516 = vmatprep.subr.mxu0 0.0
    %517 = vmatpush1.msra.mxu0 %v414
    %518 = vmatprep.subr.mxu0 0.0
    %519 = vmatpush1.msra.mxu0 %v413
    %520 = vmatprep.subr.mxu0 0.0
    %521 = vmatpush1.msra.mxu0 %v412
    %522 = vmatprep.subr.mxu0 0.0
    %523 = vmatpush1.msra.mxu0 %v411
    %524 = vmatprep.subr.mxu0 0.0
    %525 = vmatpush1.msra.mxu0 %v410
    %526 = vmatprep.subr.mxu0 0.0
    %527 = vmatpush1.msra.mxu0 %v409
    %528 = vmatprep.subr.mxu0 0.0
    %529 = vmatpush1.msra.mxu0 %v408
    %530 = vmatprep.subr.mxu0 0.0
    %531 = vmatpush1.msra.mxu0 %v407
    %532 = vmatprep.subr.mxu0 0.0
    %533 = vmatpush1.msra.mxu0 %v406
    %534 = vmatprep.subr.mxu0 0.0
    %535 = vmatpush1.msra.mxu0 %v405
    %536 = vmatprep.subr.mxu0 0.0
    %537 = vmatpush1.msra.mxu0 %v404
    %538 = vmatprep.subr.mxu0 0.0
    %539 = vmatpush1.msra.mxu0 %v403
    %540 = vmatprep.subr.mxu0 0.0
    %541 = vmatpush1.msra.mxu0 %v402
    %542 = vmatprep.subr.mxu0 0.0
    %543 = vmatpush2.msra.mxu0 0.0
    %544 = vmatprep.subr.mxu0 0.0
    %545 = vmatpush2.msra.mxu0 0.0
    %546 = vmatprep.subr.mxu0 0.0
    %547 = vmatpush2.msra.mxu0 0.0
    %548 = vmatprep.subr.mxu0 0.0
    %549 = vmatpush2.msra.mxu0 0.0
    %550 = vmatprep.subr.mxu0 0.0
    %551 = vmatpush2.msra.mxu0 0.0
    %552 = vmatprep.subr.mxu0 0.0
    %553 = vmatpush2.msra.mxu0 0.0
    %554 = vmatprep.subr.mxu0 0.0
    %555 = vmatpush2.msra.mxu0 0.0
    %556 = vmatprep.subr.mxu0 0.0
    %557 = vmatpush2.msra.mxu0 0.0
    %558 = vmatprep.subr.mxu0 0.0
    %559 = vmatpush2.msra.mxu0 0.0
    %560 = vmatprep.subr.mxu0 0.0
    %561 = vmatpush2.msra.mxu0 0.0
    %562 = vmatprep.subr.mxu0 0.0
    %563 = vmatpush2.msra.mxu0 0.0
    %564 = vmatprep.subr.mxu0 0.0
    %565 = vmatpush2.msra.mxu0 0.0
    %566 = vmatprep.subr.mxu0 0.0
    %567 = vmatpush2.msra.mxu0 0.0
    %568 = vmatprep.subr.mxu0 0.0
    %569 = vmatpush2.msra.mxu0 0.0
    %570 = vmatprep.subr.mxu0 0.0
    %571 = vmatpush2.msra.mxu0 0.0
    %572 = vmatprep.subr.mxu0 0.0
    %573 = vmatpush2.msra.mxu0 0.0
    %574 = vmatprep.mubr.f32.mxu0 0.0
    %575 = vmatmul.mubr.f32.gmra.mxu0 %v118
    %v576 = vpop.f32.mrf.mxu0
    %v577 = vadd.f32 %v502, %v576
    %v578 = vpop.f32.mrf.mxu0
    %579 = vmatprep.mubr.f32.mxu0 0.0
    %580 = vmatmul.mubr.f32.gmra.mxu0 %v119
    %v581 = vpop.f32.mrf.mxu0
    %v582 = vadd.f32 %v507, %v581
    %v583 = vpop.f32.mrf.mxu0
    %584 = vdwg.mxu0
    %s585 = scalar_lea.vmem [#allocation5], 896
    %v586 = vld [vmem:[%s585] sm:$0xff]
    %v587 = vld [vmem:[%s585 + $0x8] sm:$0xff]
    %v588 = vld [vmem:[%s585 + $0x10] sm:$0xff]
    %v589 = vld [vmem:[%s585 + $0x18] sm:$0xff]
    %v590 = vld [vmem:[%s585 + $0x20] sm:$0xff]
    %v591 = vld [vmem:[%s585 + $0x28] sm:$0xff]
    %v592 = vld [vmem:[%s585 + $0x30] sm:$0xff]
    %v593 = vld [vmem:[%s585 + $0x38] sm:$0xff]
    %v594 = vld [vmem:[%s585 + $0x40] sm:$0xff]
    %v595 = vld [vmem:[%s585 + $0x48] sm:$0xff]
    %v596 = vld [vmem:[%s585 + $0x50] sm:$0xff]
    %v597 = vld [vmem:[%s585 + $0x58] sm:$0xff]
    %v598 = vld [vmem:[%s585 + $0x60] sm:$0xff]
    %v599 = vld [vmem:[%s585 + $0x68] sm:$0xff]
    %v600 = vld [vmem:[%s585 + $0x70] sm:$0xff]
    %v601 = vld [vmem:[%s585 + $0x78] sm:$0xff]
    %602 = vmatprep.subr.mxu0 0.0
    %603 = vmatpush1.msra.mxu0 %v601
    %604 = vmatprep.subr.mxu0 0.0
    %605 = vmatpush1.msra.mxu0 %v600
    %606 = vmatprep.subr.mxu0 0.0
    %607 = vmatpush1.msra.mxu0 %v599
    %608 = vmatprep.subr.mxu0 0.0
    %609 = vmatpush1.msra.mxu0 %v598
    %610 = vmatprep.subr.mxu0 0.0
    %611 = vmatpush1.msra.mxu0 %v597
    %612 = vmatprep.subr.mxu0 0.0
    %613 = vmatpush1.msra.mxu0 %v596
    %614 = vmatprep.subr.mxu0 0.0
    %615 = vmatpush1.msra.mxu0 %v595
    %616 = vmatprep.subr.mxu0 0.0
    %617 = vmatpush1.msra.mxu0 %v594
    %618 = vmatprep.subr.mxu0 0.0
    %619 = vmatpush1.msra.mxu0 %v593
    %620 = vmatprep.subr.mxu0 0.0
    %621 = vmatpush1.msra.mxu0 %v592
    %622 = vmatprep.subr.mxu0 0.0
    %623 = vmatpush1.msra.mxu0 %v591
    %624 = vmatprep.subr.mxu0 0.0
    %625 = vmatpush1.msra.mxu0 %v590
    %626 = vmatprep.subr.mxu0 0.0
    %627 = vmatpush1.msra.mxu0 %v589
    %628 = vmatprep.subr.mxu0 0.0
    %629 = vmatpush1.msra.mxu0 %v588
    %630 = vmatprep.subr.mxu0 0.0
    %631 = vmatpush1.msra.mxu0 %v587
    %632 = vmatprep.subr.mxu0 0.0
    %633 = vmatpush1.msra.mxu0 %v586
    %634 = vmatprep.subr.mxu0 0.0
    %635 = vmatpush2.msra.mxu0 0.0
    %636 = vmatprep.subr.mxu0 0.0
    %637 = vmatpush2.msra.mxu0 0.0
    %638 = vmatprep.subr.mxu0 0.0
    %639 = vmatpush2.msra.mxu0 0.0
    %640 = vmatprep.subr.mxu0 0.0
    %641 = vmatpush2.msra.mxu0 0.0
    %642 = vmatprep.subr.mxu0 0.0
    %643 = vmatpush2.msra.mxu0 0.0
    %644 = vmatprep.subr.mxu0 0.0
    %645 = vmatpush2.msra.mxu0 0.0
    %646 = vmatprep.subr.mxu0 0.0
    %647 = vmatpush2.msra.mxu0 0.0
    %648 = vmatprep.subr.mxu0 0.0
    %649 = vmatpush2.msra.mxu0 0.0
    %650 = vmatprep.subr.mxu0 0.0
    %651 = vmatpush2.msra.mxu0 0.0
    %652 = vmatprep.subr.mxu0 0.0
    %653 = vmatpush2.msra.mxu0 0.0
    %654 = vmatprep.subr.mxu0 0.0
    %655 = vmatpush2.msra.mxu0 0.0
    %656 = vmatprep.subr.mxu0 0.0
    %657 = vmatpush2.msra.mxu0 0.0
    %658 = vmatprep.subr.mxu0 0.0
    %659 = vmatpush2.msra.mxu0 0.0
    %660 = vmatprep.subr.mxu0 0.0
    %661 = vmatpush2.msra.mxu0 0.0
    %662 = vmatprep.subr.mxu0 0.0
    %663 = vmatpush2.msra.mxu0 0.0
    %664 = vmatprep.subr.mxu0 0.0
    %665 = vmatpush2.msra.mxu0 0.0
    %666 = vmatprep.mubr.f32.mxu0 0.0
    %667 = vmatmul.mubr.f32.gmra.mxu0 %v122
    %v668 = vpop.f32.mrf.mxu0
    %v669 = vadd.f32 0.0, %v668
    %v670 = vpop.f32.mrf.mxu0
    %671 = vmatprep.mubr.f32.mxu0 0.0
    %672 = vmatmul.mubr.f32.gmra.mxu0 %v123
    %v673 = vpop.f32.mrf.mxu0
    %v674 = vadd.f32 0.0, %v673
    %v675 = vpop.f32.mrf.mxu0
    %676 = vdwg.mxu0
    %v677 = vadd.f32 %v577, %v669
    %v678 = vadd.f32 %v582, %v674
    %s679 = scalar_lea.vmem [#allocation5], 256
    %v680 = vld [vmem:[%s679] sm:$0xff]
    %v681 = vld [vmem:[%s679 + $0x8] sm:$0xff]
    %v682 = vld [vmem:[%s679 + $0x10] sm:$0xff]
    %v683 = vld [vmem:[%s679 + $0x18] sm:$0xff]
    %v684 = vld [vmem:[%s679 + $0x20] sm:$0xff]
    %v685 = vld [vmem:[%s679 + $0x28] sm:$0xff]
    %v686 = vld [vmem:[%s679 + $0x30] sm:$0xff]
    %v687 = vld [vmem:[%s679 + $0x38] sm:$0xff]
    %v688 = vld [vmem:[%s679 + $0x40] sm:$0xff]
    %v689 = vld [vmem:[%s679 + $0x48] sm:$0xff]
    %v690 = vld [vmem:[%s679 + $0x50] sm:$0xff]
    %v691 = vld [vmem:[%s679 + $0x58] sm:$0xff]
    %v692 = vld [vmem:[%s679 + $0x60] sm:$0xff]
    %v693 = vld [vmem:[%s679 + $0x68] sm:$0xff]
    %v694 = vld [vmem:[%s679 + $0x70] sm:$0xff]
    %v695 = vld [vmem:[%s679 + $0x78] sm:$0xff]
    %s696 = scalar_lea.vmem [#allocation5], 640
    %v697 = vld [vmem:[%s696] sm:$0xff]
    %v698 = vld [vmem:[%s696 + $0x8] sm:$0xff]
    %v699 = vld [vmem:[%s696 + $0x10] sm:$0xff]
    %v700 = vld [vmem:[%s696 + $0x18] sm:$0xff]
    %v701 = vld [vmem:[%s696 + $0x20] sm:$0xff]
    %v702 = vld [vmem:[%s696 + $0x28] sm:$0xff]
    %v703 = vld [vmem:[%s696 + $0x30] sm:$0xff]
    %v704 = vld [vmem:[%s696 + $0x38] sm:$0xff]
    %v705 = vld [vmem:[%s696 + $0x40] sm:$0xff]
    %v706 = vld [vmem:[%s696 + $0x48] sm:$0xff]
    %v707 = vld [vmem:[%s696 + $0x50] sm:$0xff]
    %v708 = vld [vmem:[%s696 + $0x58] sm:$0xff]
    %v709 = vld [vmem:[%s696 + $0x60] sm:$0xff]
    %v710 = vld [vmem:[%s696 + $0x68] sm:$0xff]
    %v711 = vld [vmem:[%s696 + $0x70] sm:$0xff]
    %v712 = vld [vmem:[%s696 + $0x78] sm:$0xff]
    %713 = vmatprep.subr.mxu0 0.0
    %714 = vmatpush1.msra.mxu0 %v712
    %715 = vmatprep.subr.mxu0 0.0
    %716 = vmatpush1.msra.mxu0 %v711
    %717 = vmatprep.subr.mxu0 0.0
    %718 = vmatpush1.msra.mxu0 %v710
    %719 = vmatprep.subr.mxu0 0.0
    %720 = vmatpush1.msra.mxu0 %v709
    %721 = vmatprep.subr.mxu0 0.0
    %722 = vmatpush1.msra.mxu0 %v708
    %723 = vmatprep.subr.mxu0 0.0
    %724 = vmatpush1.msra.mxu0 %v707
    %725 = vmatprep.subr.mxu0 0.0
    %726 = vmatpush1.msra.mxu0 %v706
    %727 = vmatprep.subr.mxu0 0.0
    %728 = vmatpush1.msra.mxu0 %v705
    %729 = vmatprep.subr.mxu0 0.0
    %730 = vmatpush1.msra.mxu0 %v704
    %731 = vmatprep.subr.mxu0 0.0
    %732 = vmatpush1.msra.mxu0 %v703
    %733 = vmatprep.subr.mxu0 0.0
    %734 = vmatpush1.msra.mxu0 %v702
    %735 = vmatprep.subr.mxu0 0.0
    %736 = vmatpush1.msra.mxu0 %v701
    %737 = vmatprep.subr.mxu0 0.0
    %738 = vmatpush1.msra.mxu0 %v700
    %739 = vmatprep.subr.mxu0 0.0
    %740 = vmatpush1.msra.mxu0 %v699
    %741 = vmatprep.subr.mxu0 0.0
    %742 = vmatpush1.msra.mxu0 %v698
    %743 = vmatprep.subr.mxu0 0.0
    %744 = vmatpush1.msra.mxu0 %v697
    %745 = vmatprep.subr.mxu0 0.0
    %746 = vmatpush2.msra.mxu0 0.0
    %747 = vmatprep.subr.mxu0 0.0
    %748 = vmatpush2.msra.mxu0 0.0
    %749 = vmatprep.subr.mxu0 0.0
    %750 = vmatpush2.msra.mxu0 0.0
    %751 = vmatprep.subr.mxu0 0.0
    %752 = vmatpush2.msra.mxu0 0.0
    %753 = vmatprep.subr.mxu0 0.0
    %754 = vmatpush2.msra.mxu0 0.0
    %755 = vmatprep.subr.mxu0 0.0
    %756 = vmatpush2.msra.mxu0 0.0
    %757 = vmatprep.subr.mxu0 0.0
    %758 = vmatpush2.msra.mxu0 0.0
    %759 = vmatprep.subr.mxu0 0.0
    %760 = vmatpush2.msra.mxu0 0.0
    %761 = vmatprep.subr.mxu0 0.0
    %762 = vmatpush2.msra.mxu0 0.0
    %763 = vmatprep.subr.mxu0 0.0
    %764 = vmatpush2.msra.mxu0 0.0
    %765 = vmatprep.subr.mxu0 0.0
    %766 = vmatpush2.msra.mxu0 0.0
    %767 = vmatprep.subr.mxu0 0.0
    %768 = vmatpush2.msra.mxu0 0.0
    %769 = vmatprep.subr.mxu0 0.0
    %770 = vmatpush2.msra.mxu0 0.0
    %771 = vmatprep.subr.mxu0 0.0
    %772 = vmatpush2.msra.mxu0 0.0
    %773 = vmatprep.subr.mxu0 0.0
    %774 = vmatpush2.msra.mxu0 0.0
    %775 = vmatprep.subr.mxu0 0.0
    %776 = vmatpush2.msra.mxu0 0.0
    %777 = vmatprep.mubr.f32.mxu0 0.0
    %778 = vmatmul.mubr.f32.gmra.mxu0 %v120
    %v779 = vpop.f32.mrf.mxu0
    %v780 = vadd.f32 0.0, %v779
    %v781 = vpop.f32.mrf.mxu0
    %782 = vmatprep.mubr.f32.mxu0 0.0
    %783 = vmatmul.mubr.f32.gmra.mxu0 %v121
    %v784 = vpop.f32.mrf.mxu0
    %v785 = vadd.f32 0.0, %v784
    %v786 = vpop.f32.mrf.mxu0
    %787 = vdwg.mxu0
    %788 = vmatprep.subr.mxu0 0.0
    %789 = vmatpush1.msra.mxu0 %v695
    %790 = vmatprep.subr.mxu0 0.0
    %791 = vmatpush1.msra.mxu0 %v694
    %792 = vmatprep.subr.mxu0 0.0
    %793 = vmatpush1.msra.mxu0 %v693
    %794 = vmatprep.subr.mxu0 0.0
    %795 = vmatpush1.msra.mxu0 %v692
    %796 = vmatprep.subr.mxu0 0.0
    %797 = vmatpush1.msra.mxu0 %v691
    %798 = vmatprep.subr.mxu0 0.0
    %799 = vmatpush1.msra.mxu0 %v690
    %800 = vmatprep.subr.mxu0 0.0
    %801 = vmatpush1.msra.mxu0 %v689
    %802 = vmatprep.subr.mxu0 0.0
    %803 = vmatpush1.msra.mxu0 %v688
    %804 = vmatprep.subr.mxu0 0.0
    %805 = vmatpush1.msra.mxu0 %v687
    %806 = vmatprep.subr.mxu0 0.0
    %807 = vmatpush1.msra.mxu0 %v686
    %808 = vmatprep.subr.mxu0 0.0
    %809 = vmatpush1.msra.mxu0 %v685
    %810 = vmatprep.subr.mxu0 0.0
    %811 = vmatpush1.msra.mxu0 %v684
    %812 = vmatprep.subr.mxu0 0.0
    %813 = vmatpush1.msra.mxu0 %v683
    %814 = vmatprep.subr.mxu0 0.0
    %815 = vmatpush1.msra.mxu0 %v682
    %816 = vmatprep.subr.mxu0 0.0
    %817 = vmatpush1.msra.mxu0 %v681
    %818 = vmatprep.subr.mxu0 0.0
    %819 = vmatpush1.msra.mxu0 %v680
    %820 = vmatprep.subr.mxu0 0.0
    %821 = vmatpush2.msra.mxu0 0.0
    %822 = vmatprep.subr.mxu0 0.0
    %823 = vmatpush2.msra.mxu0 0.0
    %824 = vmatprep.subr.mxu0 0.0
    %825 = vmatpush2.msra.mxu0 0.0
    %826 = vmatprep.subr.mxu0 0.0
    %827 = vmatpush2.msra.mxu0 0.0
    %828 = vmatprep.subr.mxu0 0.0
    %829 = vmatpush2.msra.mxu0 0.0
    %830 = vmatprep.subr.mxu0 0.0
    %831 = vmatpush2.msra.mxu0 0.0
    %832 = vmatprep.subr.mxu0 0.0
    %833 = vmatpush2.msra.mxu0 0.0
    %834 = vmatprep.subr.mxu0 0.0
    %835 = vmatpush2.msra.mxu0 0.0
    %836 = vmatprep.subr.mxu0 0.0
    %837 = vmatpush2.msra.mxu0 0.0
    %838 = vmatprep.subr.mxu0 0.0
    %839 = vmatpush2.msra.mxu0 0.0
    %840 = vmatprep.subr.mxu0 0.0
    %841 = vmatpush2.msra.mxu0 0.0
    %842 = vmatprep.subr.mxu0 0.0
    %843 = vmatpush2.msra.mxu0 0.0
    %844 = vmatprep.subr.mxu0 0.0
    %845 = vmatpush2.msra.mxu0 0.0
    %846 = vmatprep.subr.mxu0 0.0
    %847 = vmatpush2.msra.mxu0 0.0
    %848 = vmatprep.subr.mxu0 0.0
    %849 = vmatpush2.msra.mxu0 0.0
    %850 = vmatprep.subr.mxu0 0.0
    %851 = vmatpush2.msra.mxu0 0.0
    %852 = vmatprep.mubr.f32.mxu0 0.0
    %853 = vmatmul.mubr.f32.gmra.mxu0 %v118
    %v854 = vpop.f32.mrf.mxu0
    %v855 = vadd.f32 %v780, %v854
    %v856 = vpop.f32.mrf.mxu0
    %857 = vmatprep.mubr.f32.mxu0 0.0
    %858 = vmatmul.mubr.f32.gmra.mxu0 %v119
    %v859 = vpop.f32.mrf.mxu0
    %v860 = vadd.f32 %v785, %v859
    %v861 = vpop.f32.mrf.mxu0
    %862 = vdwg.mxu0
    %s863 = scalar_lea.vmem [#allocation5], 1024
    %v864 = vld [vmem:[%s863] sm:$0xff]
    %v865 = vld [vmem:[%s863 + $0x8] sm:$0xff]
    %v866 = vld [vmem:[%s863 + $0x10] sm:$0xff]
    %v867 = vld [vmem:[%s863 + $0x18] sm:$0xff]
    %v868 = vld [vmem:[%s863 + $0x20] sm:$0xff]
    %v869 = vld [vmem:[%s863 + $0x28] sm:$0xff]
    %v870 = vld [vmem:[%s863 + $0x30] sm:$0xff]
    %v871 = vld [vmem:[%s863 + $0x38] sm:$0xff]
    %v872 = vld [vmem:[%s863 + $0x40] sm:$0xff]
    %v873 = vld [vmem:[%s863 + $0x48] sm:$0xff]
    %v874 = vld [vmem:[%s863 + $0x50] sm:$0xff]
    %v875 = vld [vmem:[%s863 + $0x58] sm:$0xff]
    %v876 = vld [vmem:[%s863 + $0x60] sm:$0xff]
    %v877 = vld [vmem:[%s863 + $0x68] sm:$0xff]
    %v878 = vld [vmem:[%s863 + $0x70] sm:$0xff]
    %v879 = vld [vmem:[%s863 + $0x78] sm:$0xff]
    %880 = vmatprep.subr.mxu0 0.0
    %881 = vmatpush1.msra.mxu0 %v879
    %882 = vmatprep.subr.mxu0 0.0
    %883 = vmatpush1.msra.mxu0 %v878
    %884 = vmatprep.subr.mxu0 0.0
    %885 = vmatpush1.msra.mxu0 %v877
    %886 = vmatprep.subr.mxu0 0.0
    %887 = vmatpush1.msra.mxu0 %v876
    %888 = vmatprep.subr.mxu0 0.0
    %889 = vmatpush1.msra.mxu0 %v875
    %890 = vmatprep.subr.mxu0 0.0
    %891 = vmatpush1.msra.mxu0 %v874
    %892 = vmatprep.subr.mxu0 0.0
    %893 = vmatpush1.msra.mxu0 %v873
    %894 = vmatprep.subr.mxu0 0.0
    %895 = vmatpush1.msra.mxu0 %v872
    %896 = vmatprep.subr.mxu0 0.0
    %897 = vmatpush1.msra.mxu0 %v871
    %898 = vmatprep.subr.mxu0 0.0
    %899 = vmatpush1.msra.mxu0 %v870
    %900 = vmatprep.subr.mxu0 0.0
    %901 = vmatpush1.msra.mxu0 %v869
    %902 = vmatprep.subr.mxu0 0.0
    %903 = vmatpush1.msra.mxu0 %v868
    %904 = vmatprep.subr.mxu0 0.0
    %905 = vmatpush1.msra.mxu0 %v867
    %906 = vmatprep.subr.mxu0 0.0
    %907 = vmatpush1.msra.mxu0 %v866
    %908 = vmatprep.subr.mxu0 0.0
    %909 = vmatpush1.msra.mxu0 %v865
    %910 = vmatprep.subr.mxu0 0.0
    %911 = vmatpush1.msra.mxu0 %v864
    %912 = vmatprep.subr.mxu0 0.0
    %913 = vmatpush2.msra.mxu0 0.0
    %914 = vmatprep.subr.mxu0 0.0
    %915 = vmatpush2.msra.mxu0 0.0
    %916 = vmatprep.subr.mxu0 0.0
    %917 = vmatpush2.msra.mxu0 0.0
    %918 = vmatprep.subr.mxu0 0.0
    %919 = vmatpush2.msra.mxu0 0.0
    %920 = vmatprep.subr.mxu0 0.0
    %921 = vmatpush2.msra.mxu0 0.0
    %922 = vmatprep.subr.mxu0 0.0
    %923 = vmatpush2.msra.mxu0 0.0
    %924 = vmatprep.subr.mxu0 0.0
    %925 = vmatpush2.msra.mxu0 0.0
    %926 = vmatprep.subr.mxu0 0.0
    %927 = vmatpush2.msra.mxu0 0.0
    %928 = vmatprep.subr.mxu0 0.0
    %929 = vmatpush2.msra.mxu0 0.0
    %930 = vmatprep.subr.mxu0 0.0
    %931 = vmatpush2.msra.mxu0 0.0
    %932 = vmatprep.subr.mxu0 0.0
    %933 = vmatpush2.msra.mxu0 0.0
    %934 = vmatprep.subr.mxu0 0.0
    %935 = vmatpush2.msra.mxu0 0.0
    %936 = vmatprep.subr.mxu0 0.0
    %937 = vmatpush2.msra.mxu0 0.0
    %938 = vmatprep.subr.mxu0 0.0
    %939 = vmatpush2.msra.mxu0 0.0
    %940 = vmatprep.subr.mxu0 0.0
    %941 = vmatpush2.msra.mxu0 0.0
    %942 = vmatprep.subr.mxu0 0.0
    %943 = vmatpush2.msra.mxu0 0.0
    %944 = vmatprep.mubr.f32.mxu0 0.0
    %945 = vmatmul.mubr.f32.gmra.mxu0 %v122
    %v946 = vpop.f32.mrf.mxu0
    %v947 = vadd.f32 0.0, %v946
    %v948 = vpop.f32.mrf.mxu0
    %949 = vmatprep.mubr.f32.mxu0 0.0
    %950 = vmatmul.mubr.f32.gmra.mxu0 %v123
    %v951 = vpop.f32.mrf.mxu0
    %v952 = vadd.f32 0.0, %v951
    %v953 = vpop.f32.mrf.mxu0
    %954 = vdwg.mxu0
    %v955 = vadd.f32 %v855, %v947
    %v956 = vadd.f32 %v860, %v952
    %v957 = vld [vmem:[%s1] sm:$0xff]
    %v958 = vld [vmem:[%s1 + $0x8] sm:$0xff]
    %960 = vset.pattern.permute.xlu0 0
    %961 = vperm.xlu0 %960, %v957
    %v962 = vpop.permute.xlu0 %961
    %965 = vset.pattern.permute.xlu0 0
    %966 = vperm.xlu0 %965, %v958
    %v967 = vpop.permute.xlu0 %966
    %v969 = vlaneseq
    %v970 = vshrl.u32 %v969, 7
    %v971 = vsub.s32 0, %v970
    %v972 = vrot.slane %v677, %v971
    %v973 = vlaneseq
    %v974 = vshrl.u32 %v973, 7
    %v975 = vsub.s32 0, %v974
    %v976 = vrot.slane %v678, %v975
    %v977 = vmul.f32 %v962, %v972
    %v978 = vmul.f32 %v967, %v976
    %979 = vset.pattern.permute.xlu0 1
    %980 = vperm.xlu0 %979, %v957
    %v981 = vpop.permute.xlu0 %980
    %983 = vset.pattern.permute.xlu0 1
    %984 = vperm.xlu0 %983, %v958
    %v985 = vpop.permute.xlu0 %984
    %v987 = vlaneseq
    %v988 = vshrl.u32 %v987, 7
    %v989 = vsub.s32 1, %v988
    %v990 = vrot.slane %v677, %v989
    %v991 = vlaneseq
    %v992 = vshrl.u32 %v991, 7
    %v993 = vsub.s32 1, %v992
    %v994 = vrot.slane %v678, %v993
    %v995 = vmul.f32 %v981, %v990
    %v996 = vmul.f32 %v985, %v994
    %v997 = vadd.f32 %v977, %v995
    %v998 = vadd.f32 %v978, %v996
    %999 = vset.pattern.permute.xlu0 2
    %1000 = vperm.xlu0 %999, %v957
    %v1001 = vpop.permute.xlu0 %1000
    %1003 = vset.pattern.permute.xlu0 2
    %1004 = vperm.xlu0 %1003, %v958
    %v1005 = vpop.permute.xlu0 %1004
    %v1007 = vlaneseq
    %v1008 = vshrl.u32 %v1007, 7
    %v1009 = vsub.s32 2, %v1008
    %v1010 = vrot.slane %v677, %v1009
    %v1011 = vlaneseq
    %v1012 = vshrl.u32 %v1011, 7
    %v1013 = vsub.s32 2, %v1012
    %v1014 = vrot.slane %v678, %v1013
    %v1015 = vmul.f32 %v1001, %v1010
    %v1016 = vmul.f32 %v1005, %v1014
    %v1017 = vadd.f32 %v997, %v1015
    %v1018 = vadd.f32 %v998, %v1016
    %1019 = vset.pattern.permute.xlu0 3
    %1020 = vperm.xlu0 %1019, %v957
    %v1021 = vpop.permute.xlu0 %1020
    %1023 = vset.pattern.permute.xlu0 3
    %1024 = vperm.xlu0 %1023, %v958
    %v1025 = vpop.permute.xlu0 %1024
    %v1027 = vlaneseq
    %v1028 = vshrl.u32 %v1027, 7
    %v1029 = vsub.s32 3, %v1028
    %v1030 = vrot.slane %v677, %v1029
    %v1031 = vlaneseq
    %v1032 = vshrl.u32 %v1031, 7
    %v1033 = vsub.s32 3, %v1032
    %v1034 = vrot.slane %v678, %v1033
    %v1035 = vmul.f32 %v1021, %v1030
    %v1036 = vmul.f32 %v1025, %v1034
    %v1037 = vadd.f32 %v1017, %v1035
    %v1038 = vadd.f32 %v1018, %v1036
    %1039 = vset.pattern.permute.xlu0 4
    %1040 = vperm.xlu0 %1039, %v957
    %v1041 = vpop.permute.xlu0 %1040
    %1043 = vset.pattern.permute.xlu0 4
    %1044 = vperm.xlu0 %1043, %v958
    %v1045 = vpop.permute.xlu0 %1044
    %v1047 = vlaneseq
    %v1048 = vshrl.u32 %v1047, 7
    %v1049 = vsub.s32 4, %v1048
    %v1050 = vrot.slane %v677, %v1049
    %v1051 = vlaneseq
    %v1052 = vshrl.u32 %v1051, 7
    %v1053 = vsub.s32 4, %v1052
    %v1054 = vrot.slane %v678, %v1053
    %v1055 = vmul.f32 %v1041, %v1050
    %v1056 = vmul.f32 %v1045, %v1054
    %v1057 = vadd.f32 %v1037, %v1055
    %v1058 = vadd.f32 %v1038, %v1056
    %1059 = vset.pattern.permute.xlu0 5
    %1060 = vperm.xlu0 %1059, %v957
    %v1061 = vpop.permute.xlu0 %1060
    %1063 = vset.pattern.permute.xlu0 5
    %1064 = vperm.xlu0 %1063, %v958
    %v1065 = vpop.permute.xlu0 %1064
    %v1067 = vlaneseq
    %v1068 = vshrl.u32 %v1067, 7
    %v1069 = vsub.s32 5, %v1068
    %v1070 = vrot.slane %v677, %v1069
    %v1071 = vlaneseq
    %v1072 = vshrl.u32 %v1071, 7
    %v1073 = vsub.s32 5, %v1072
    %v1074 = vrot.slane %v678, %v1073
    %v1075 = vmul.f32 %v1061, %v1070
    %v1076 = vmul.f32 %v1065, %v1074
    %v1077 = vadd.f32 %v1057, %v1075
    %v1078 = vadd.f32 %v1058, %v1076
    %1079 = vset.pattern.permute.xlu0 6
    %1080 = vperm.xlu0 %1079, %v957
    %v1081 = vpop.permute.xlu0 %1080
    %1083 = vset.pattern.permute.xlu0 6
    %1084 = vperm.xlu0 %1083, %v958
    %v1085 = vpop.permute.xlu0 %1084
    %v1087 = vlaneseq
    %v1088 = vshrl.u32 %v1087, 7
    %v1089 = vsub.s32 6, %v1088
    %v1090 = vrot.slane %v677, %v1089
    %v1091 = vlaneseq
    %v1092 = vshrl.u32 %v1091, 7
    %v1093 = vsub.s32 6, %v1092
    %v1094 = vrot.slane %v678, %v1093
    %v1095 = vmul.f32 %v1081, %v1090
    %v1096 = vmul.f32 %v1085, %v1094
    %v1097 = vadd.f32 %v1077, %v1095
    %v1098 = vadd.f32 %v1078, %v1096
    %1099 = vset.pattern.permute.xlu0 7
    %1100 = vperm.xlu0 %1099, %v957
    %v1101 = vpop.permute.xlu0 %1100
    %1103 = vset.pattern.permute.xlu0 7
    %1104 = vperm.xlu0 %1103, %v958
    %v1105 = vpop.permute.xlu0 %1104
    %v1107 = vlaneseq
    %v1108 = vshrl.u32 %v1107, 7
    %v1109 = vsub.s32 7, %v1108
    %v1110 = vrot.slane %v677, %v1109
    %v1111 = vlaneseq
    %v1112 = vshrl.u32 %v1111, 7
    %v1113 = vsub.s32 7, %v1112
    %v1114 = vrot.slane %v678, %v1113
    %v1115 = vmul.f32 %v1101, %v1110
    %v1116 = vmul.f32 %v1105, %v1114
    %v1117 = vadd.f32 %v1097, %v1115
    %v1118 = vadd.f32 %v1098, %v1116
    %v1119 = vadd.f32 %v399, %v1117
    %v1120 = vadd.f32 %v400, %v1118
    %v1121 = vld [vmem:[#allocation2] sm:$0xff]
    %v1122 = vld [vmem:[#allocation2 + $0x8] sm:$0xff]
    %1124 = vset.pattern.permute.xlu0 0
    %1125 = vperm.xlu0 %1124, %v1121
    %v1126 = vpop.permute.xlu0 %1125
    %1129 = vset.pattern.permute.xlu0 0
    %1130 = vperm.xlu0 %1129, %v1122
    %v1131 = vpop.permute.xlu0 %1130
    %v1133 = vlaneseq
    %v1134 = vshrl.u32 %v1133, 7
    %v1135 = vsub.s32 0, %v1134
    %v1136 = vrot.slane %v955, %v1135
    %v1137 = vlaneseq
    %v1138 = vshrl.u32 %v1137, 7
    %v1139 = vsub.s32 0, %v1138
    %v1140 = vrot.slane %v956, %v1139
    %v1141 = vmul.f32 %v1126, %v1136
    %v1142 = vmul.f32 %v1131, %v1140
    %1143 = vset.pattern.permute.xlu0 1
    %1144 = vperm.xlu0 %1143, %v1121
    %v1145 = vpop.permute.xlu0 %1144
    %1147 = vset.pattern.permute.xlu0 1
    %1148 = vperm.xlu0 %1147, %v1122
    %v1149 = vpop.permute.xlu0 %1148
    %v1151 = vlaneseq
    %v1152 = vshrl.u32 %v1151, 7
    %v1153 = vsub.s32 1, %v1152
    %v1154 = vrot.slane %v955, %v1153
    %v1155 = vlaneseq
    %v1156 = vshrl.u32 %v1155, 7
    %v1157 = vsub.s32 1, %v1156
    %v1158 = vrot.slane %v956, %v1157
    %v1159 = vmul.f32 %v1145, %v1154
    %v1160 = vmul.f32 %v1149, %v1158
    %v1161 = vadd.f32 %v1141, %v1159
    %v1162 = vadd.f32 %v1142, %v1160
    %1163 = vset.pattern.permute.xlu0 2
    %1164 = vperm.xlu0 %1163, %v1121
    %v1165 = vpop.permute.xlu0 %1164
    %1167 = vset.pattern.permute.xlu0 2
    %1168 = vperm.xlu0 %1167, %v1122
    %v1169 = vpop.permute.xlu0 %1168
    %v1171 = vlaneseq
    %v1172 = vshrl.u32 %v1171, 7
    %v1173 = vsub.s32 2, %v1172
    %v1174 = vrot.slane %v955, %v1173
    %v1175 = vlaneseq
    %v1176 = vshrl.u32 %v1175, 7
    %v1177 = vsub.s32 2, %v1176
    %v1178 = vrot.slane %v956, %v1177
    %v1179 = vmul.f32 %v1165, %v1174
    %v1180 = vmul.f32 %v1169, %v1178
    %v1181 = vadd.f32 %v1161, %v1179
    %v1182 = vadd.f32 %v1162, %v1180
    %1183 = vset.pattern.permute.xlu0 3
    %1184 = vperm.xlu0 %1183, %v1121
    %v1185 = vpop.permute.xlu0 %1184
    %1187 = vset.pattern.permute.xlu0 3
    %1188 = vperm.xlu0 %1187, %v1122
    %v1189 = vpop.permute.xlu0 %1188
    %v1191 = vlaneseq
    %v1192 = vshrl.u32 %v1191, 7
    %v1193 = vsub.s32 3, %v1192
    %v1194 = vrot.slane %v955, %v1193
    %v1195 = vlaneseq
    %v1196 = vshrl.u32 %v1195, 7
    %v1197 = vsub.s32 3, %v1196
    %v1198 = vrot.slane %v956, %v1197
    %v1199 = vmul.f32 %v1185, %v1194
    %v1200 = vmul.f32 %v1189, %v1198
    %v1201 = vadd.f32 %v1181, %v1199
    %v1202 = vadd.f32 %v1182, %v1200
    %1203 = vset.pattern.permute.xlu0 4
    %1204 = vperm.xlu0 %1203, %v1121
    %v1205 = vpop.permute.xlu0 %1204
    %1207 = vset.pattern.permute.xlu0 4
    %1208 = vperm.xlu0 %1207, %v1122
    %v1209 = vpop.permute.xlu0 %1208
    %v1211 = vlaneseq
    %v1212 = vshrl.u32 %v1211, 7
    %v1213 = vsub.s32 4, %v1212
    %v1214 = vrot.slane %v955, %v1213
    %v1215 = vlaneseq
    %v1216 = vshrl.u32 %v1215, 7
    %v1217 = vsub.s32 4, %v1216
    %v1218 = vrot.slane %v956, %v1217
    %v1219 = vmul.f32 %v1205, %v1214
    %v1220 = vmul.f32 %v1209, %v1218
    %v1221 = vadd.f32 %v1201, %v1219
    %v1222 = vadd.f32 %v1202, %v1220
    %1223 = vset.pattern.permute.xlu0 5
    %1224 = vperm.xlu0 %1223, %v1121
    %v1225 = vpop.permute.xlu0 %1224
    %1227 = vset.pattern.permute.xlu0 5
    %1228 = vperm.xlu0 %1227, %v1122
    %v1229 = vpop.permute.xlu0 %1228
    %v1231 = vlaneseq
    %v1232 = vshrl.u32 %v1231, 7
    %v1233 = vsub.s32 5, %v1232
    %v1234 = vrot.slane %v955, %v1233
    %v1235 = vlaneseq
    %v1236 = vshrl.u32 %v1235, 7
    %v1237 = vsub.s32 5, %v1236
    %v1238 = vrot.slane %v956, %v1237
    %v1239 = vmul.f32 %v1225, %v1234
    %v1240 = vmul.f32 %v1229, %v1238
    %v1241 = vadd.f32 %v1221, %v1239
    %v1242 = vadd.f32 %v1222, %v1240
    %1243 = vset.pattern.permute.xlu0 6
    %1244 = vperm.xlu0 %1243, %v1121
    %v1245 = vpop.permute.xlu0 %1244
    %1247 = vset.pattern.permute.xlu0 6
    %1248 = vperm.xlu0 %1247, %v1122
    %v1249 = vpop.permute.xlu0 %1248
    %v1251 = vlaneseq
    %v1252 = vshrl.u32 %v1251, 7
    %v1253 = vsub.s32 6, %v1252
    %v1254 = vrot.slane %v955, %v1253
    %v1255 = vlaneseq
    %v1256 = vshrl.u32 %v1255, 7
    %v1257 = vsub.s32 6, %v1256
    %v1258 = vrot.slane %v956, %v1257
    %v1259 = vmul.f32 %v1245, %v1254
    %v1260 = vmul.f32 %v1249, %v1258
    %v1261 = vadd.f32 %v1241, %v1259
    %v1262 = vadd.f32 %v1242, %v1260
    %1263 = vset.pattern.permute.xlu0 7
    %1264 = vperm.xlu0 %1263, %v1121
    %v1265 = vpop.permute.xlu0 %1264
    %1267 = vset.pattern.permute.xlu0 7
    %1268 = vperm.xlu0 %1267, %v1122
    %v1269 = vpop.permute.xlu0 %1268
    %v1271 = vlaneseq
    %v1272 = vshrl.u32 %v1271, 7
    %v1273 = vsub.s32 7, %v1272
    %v1274 = vrot.slane %v955, %v1273
    %v1275 = vlaneseq
    %v1276 = vshrl.u32 %v1275, 7
    %v1277 = vsub.s32 7, %v1276
    %v1278 = vrot.slane %v956, %v1277
    %v1279 = vmul.f32 %v1265, %v1274
    %v1280 = vmul.f32 %v1269, %v1278
    %v1281 = vadd.f32 %v1261, %v1279
    %v1282 = vadd.f32 %v1262, %v1280
    %v1283 = vadd.f32 %v1119, %v1281
    %v1284 = vadd.f32 %v1120, %v1282
    %v1285 = vld [vmem:[%s6] sm:$0x1]
    %v1287 = vlaneseq
    %v1288 = vshrl.u32 %v1287, 7
    %v1289 = vsub.s32 0, %v1288
    %v1290 = vrot.slane %v1285, %v1289
    %v1292 = vadd.f32 %v1283, %v1290
    %v1293 = vadd.f32 %v1284, %v1290
    %vm1294 = vcmp.gt.f32.partialorder %v1292, 0.0
    %vm1295 = vcmp.gt.f32.partialorder %v1293, 0.0
    %v1296 = vmul.f32 %v1292, 0.01
    %v1297 = vmul.f32 %v1293, 0.01
    %v1298 = vsel %vm1294, %v1292, %v1296
    %v1299 = vsel %vm1295, %v1293, %v1297
    %v1300 = vadd.f32 %v1298, %v118
    %v1301 = vadd.f32 %v1299, %v119
    %1302 = vst [vmem:[#allocation7] sm:$0xff] %v1300
    %1303 = vst [vmem:[#allocation7 + $0x8] sm:$0xff] %v1301
    %v1304 = vadd.f32 %v1300, %v1301
    %v1305 = vrot.slane %v1304, 4
    %v1306 = vadd.f32 %v1304, %v1305
    %v1307 = vrot.slane %v1306, 2
    %v1308 = vadd.f32 %v1306, %v1307
    %v1309 = vrot.slane %v1308, 1
    %v1310 = vadd.f32 %v1308, %v1309
    %v1311 = vmul.f32 %v1300, %v1300
    %v1312 = vmul.f32 %v1301, %v1301
    %v1313 = vadd.f32 %v1311, %v1312
    %v1314 = vrot.slane %v1313, 4
    %v1315 = vadd.f32 %v1313, %v1314
    %v1316 = vrot.slane %v1315, 2
    %v1317 = vadd.f32 %v1315, %v1316
    %v1318 = vrot.slane %v1317, 1
    %v1319 = vadd.f32 %v1317, %v1318
    %vm1320 = vcmask 1040384
    %v1321 = vsel %vm1320, %v1310, %v1319
    %1322 = vst [vmem:[#allocation8] sm:$0x3] %v1321
    // Predicated region
    $region38: #{tpu_custom_call.1} parent=1 // pred_check
      _
    $region39: #{tpu_custom_call.1} parent=1 // pred_check_branch
      %1324 = sbr.rel (0) target = $region41
    $region40: #{tpu_custom_call.1} parent=1 // pred_region
      %s1326 = ssub.s32 256, 256
      %1327 = vsyncadd [#allocation4], %s1326
      %s1328 = sshll.u32 [#allocation7], 4
      %s1329 = int_to_ptr.vmem [resolvable:$true] %s1328
      %1334 = dma.vmem_to_hbm [thread:$0]  %s1329, 256, %s7, [#allocation4], 128, 128, 8
    $region41: #{tpu_custom_call.1} parent=1 // pred_fallthru
      _
    // Predicated region
    $region42: #{tpu_custom_call.1} parent=1 // pred_check
      _
    $region43: #{tpu_custom_call.1} parent=1 // pred_check_branch
      %1336 = sbr.rel (0) target = $region45
    $region44: #{tpu_custom_call.1} parent=1 // pred_region
      %s1338 = ssub.s32 32, 32
      %1339 = vsyncadd [#allocation9], %s1338
      %s1341 = sshll.u32 [#allocation8], 4
      %s1342 = int_to_ptr.vmem [resolvable:$true] %s1341
      %1344 = dma.vmem_to_hbm [thread:$0]  %s1342, 32, %s8, [#allocation9]
    $region45: #{tpu_custom_call.1} parent=1 // pred_fallthru
      _
    // Predicated region
    $region46: #{tpu_custom_call.1} parent=1 // pred_check
      _
    $region47: #{tpu_custom_call.1} parent=1 // pred_check_branch
      %1346 = sbr.rel (0) target = $region49
    $region48: #{tpu_custom_call.1} parent=1 // pred_region
      %1347 = dma.done [#allocation4], 256
    $region49: #{tpu_custom_call.1} parent=1 // pred_fallthru
      _
    // Predicated region
    $region50: #{tpu_custom_call.1} parent=1 // pred_check
      _
    $region51: #{tpu_custom_call.1} parent=1 // pred_check_branch
      %1349 = sbr.rel (0) target = $region53
    $region52: #{tpu_custom_call.1} parent=1 // pred_region
      %1350 = dma.done [#allocation9], 32
    $region53: #{tpu_custom_call.1} parent=1 // pred_fallthru
      _
    %1351 = vsyncpa [#allocation3], 1
    %1352 = vsyncpa [#allocation6], 1
    %1353 = vsyncpa [#allocation4], 1
    %1354 = vsyncpa [#allocation9], 1

</llo_original>
